<compile_context>
chip_gen: v7x
topology: tpu7x:2x2x1
jax: 0.10.0
libtpu: 0.0.40
codegen_flags: <defaults>
</compile_context>

<pallas_src>
import functools
from typing import NamedTuple

import numpy as np
import jax
import jax.numpy as jnp
from jax.experimental import pallas as pl
from jax.experimental.pallas import tpu as pltpu


# ---------------------------------------------------------------------------
# Kernels
# ---------------------------------------------------------------------------
def _mxu_dot(a, b):
    # f32 operands: force true-f32 MXU semantics (matches f32 nn.Linear);
    # bf16 operands: native MXU path.  Accumulation is always f32.
    prec = jax.lax.Precision.HIGHEST if a.dtype == jnp.float32 else None
    return jnp.dot(a, b, precision=prec, preferred_element_type=jnp.float32)


def _resident_kernel(x_ref, w1_ref, b1_ref, w2_ref, b2_ref, out_ref):
    """relu(x @ W1 + b1) @ W2 + b2 for one row tile; weights VMEM-resident."""
    w1 = w1_ref[...]                      # [D_in_p, H_p]   (resident)
    w2 = w2_ref[...]                      # [H_p, D_out_p]  (resident)
    h = _mxu_dot(x_ref[...], w1)          # f32 accumulate
    h = jnp.maximum(h + b1_ref[...], 0.0)  # f32 bias + relu on VPU
    y = _mxu_dot(h.astype(w2.dtype), w2)
    out_ref[...] = (y + b2_ref[...]).astype(out_ref.dtype)


def _ktiled_kernel(x_ref, w1_ref, b1_ref, w2_ref, b2_ref, out_ref, acc_ref):
    """Same math with H tiled on grid axis 1 (weights streamed in panels)."""
    j = pl.program_id(1)

    @pl.when(j == 0)
    def _():
        acc_ref[...] = jnp.zeros_like(acc_ref)

    w1 = w1_ref[...]                      # [D_in_p, tk]
    w2 = w2_ref[...]                      # [tk, D_out_p]
    h = _mxu_dot(x_ref[...], w1)
    h = jnp.maximum(h + b1_ref[...], 0.0)          # relu is elementwise over H
    acc_ref[...] += _mxu_dot(h.astype(w2.dtype), w2)

    @pl.when(j == pl.num_programs(1) - 1)
    def _():
        out_ref[...] = (acc_ref[...] + b2_ref[...]).astype(out_ref.dtype)


# ---------------------------------------------------------------------------
# Helpers
# ---------------------------------------------------------------------------
def _round_up(v, m):
    return (v + m - 1) // m * m


def _pad2d(a, rows, cols):
    r, c = a.shape
    return jnp.pad(a, ((0, rows - r), (0, cols - c)))


def _vmem_budget():
    """Generation-aware (tile budget, vmem_limit_bytes)."""
    cap = None
    try:
        info_fn = getattr(pltpu, "get_tpu_info", None)
        if info_fn is not None:
            cap = int(getattr(info_fn(), "vmem_capacity_bytes", 0)) or None
    except Exception:
        cap = None
    if not cap:
        cap = 64 << 20                 # assume the tightest generation (v7x/TC)
    cap = max(cap, 32 << 20)
    budget = int(cap * 0.70)           # headroom for compiler-internal scratch
    vmem_limit = min(cap - (4 << 20), budget + (8 << 20))
    return budget, vmem_limit


def _resident_vmem_bytes(tm, d_in_p, h_p, d_out_p, stream_b, compute_b, out_b):
    # Pallas double-buffers EVERY block-spec'd operand, even with a constant
    # index_map -> 2x weights; count live f32 intermediates and the bf16 cast
    # copy of h when the MXU operands are bf16.
    weights = 2 * ((d_in_p * h_p + h_p * d_out_p) * compute_b
                   + (h_p + d_out_p) * 4)
    tiles = 2 * tm * (d_in_p * stream_b + d_out_p * out_b)
    live = tm * (h_p + d_out_p) * 4
    if compute_b < 4:
        live += tm * h_p * compute_b
    return weights + tiles + live


def _ktiled_vmem_bytes(tm, tk, d_in_p, d_out_p, stream_b, compute_b, out_b):
    weights = 2 * ((d_in_p * tk + tk * d_out_p) * compute_b
                   + (tk + d_out_p) * 4)
    tiles = 2 * tm * (d_in_p * stream_b + d_out_p * out_b)
    acc = tm * d_out_p * 4
    live = tm * (tk + d_out_p) * 4
    if compute_b < 4:
        live += tm * tk * compute_b
    return weights + tiles + acc + live


def _choose_tiling(n, d_in_p, h_p, d_out_p, stream_b, compute_b, out_b, budget):
    """Return (tm, tk); tk == 0 means resident-weight path."""
    n8 = _round_up(max(n, 1), 8)
    cands = {4096, 2048, 1024, 512, 256, 128, 64, 32, 16, 8}
    if n8 <= 1024:
        cands.add(n8)                  # single grid step for moderate batches
    tm_cands = sorted((t for t in cands if t <= max(n8, 8)), reverse=True)

    for tm in tm_cands:                # resident-weight fast path
        if _resident_vmem_bytes(tm, d_in_p, h_p, d_out_p,
                                stream_b, compute_b, out_b) <= budget:
            return tm, 0

    for tm in tm_cands:                # K-tiled fallback over H
        for tk in (2048, 1024, 512, 256, 128):
            if tk > h_p or h_p % tk:
                continue
            if _ktiled_vmem_bytes(tm, tk, d_in_p, d_out_p,
                                  stream_b, compute_b, out_b) <= budget:
                return tm, tk
    # TODO(synk): also tile D_in for inputs so wide that even tk=128 overflows.
    return 8, 128


# ---------------------------------------------------------------------------
# Parameter prep (one-time; NOT per forward)
# ---------------------------------------------------------------------------
def prepare_params(w1, b1, w2, b2, compute_dtype=jnp.float32, out_dtype=None):
    """w1:[H,D_in], b1:[H], w2:[D_out,H], b2:[D_out] (PyTorch nn.Linear layout).

    Transposes weights to [in, out], zero-pads feature dims to 128-lane
    multiples, casts weights to the MXU compute dtype (bf16 recommended,
    especially on v5e); biases stay f32 and accumulation is always f32.
    `out_dtype=None` keeps the input dtype for the output (module semantics);
    pass jnp.bfloat16 to halve output HBM traffic when acceptable.
    """
    h_dim, d_in = w1.shape
    d_out = w2.shape[0]
    compute_dtype = np.dtype(compute_dtype)

    d_in_p = _round_up(d_in, 128)
    h_p = _round_up(h_dim, 128)
    d_out_p = _round_up(d_out, 128)

    w1_p = _pad2d(jnp.transpose(w1), d_in_p, h_p).astype(compute_dtype)
    w2_p = _pad2d(jnp.transpose(w2), h_p, d_out_p).astype(compute_dtype)
    b1_p = jnp.pad(b1, (0, h_p - h_dim)).reshape(1, h_p).astype(jnp.float32)
    b2_p = jnp.pad(b2, (0, d_out_p - d_out)).reshape(1, d_out_p).astype(jnp.float32)

    return dict(
        w1=w1_p, b1=b1_p, w2=w2_p, b2=b2_p,
        d_in=int(d_in), h=int(h_dim), d_out=int(d_out),
        compute_dtype=compute_dtype.name,
        out_dtype=None if out_dtype is None else np.dtype(out_dtype).name,
    )


# ---------------------------------------------------------------------------
# Forward
# ---------------------------------------------------------------------------
class _Cfg(NamedTuple):
    n: int
    d_in: int
    d_out: int
    d_in_p: int
    h_p: int
    d_out_p: int
    tm: int
    tk: int            # 0 => resident-weight path
    n_pad: int
    stream_dtype: str
    out_dtype: str
    vmem_limit: int


@functools.partial(jax.jit, static_argnames=("cfg",))
def _forward(x, w1, b1, w2, b2, *, cfg):
    stream_dtype = np.dtype(cfg.stream_dtype)
    out_dtype = np.dtype(cfg.out_dtype)

    # Cast (bf16 streaming) and pad only when actually needed — every wrapper
    # pad/slice is an extra HBM round trip at the memory-bound roofline.
    if x.dtype != stream_dtype:
        x = x.astype(stream_dtype)
    if cfg.n_pad != cfg.n or cfg.d_in_p != cfg.d_in:
        x = jnp.pad(x, ((0, cfg.n_pad - cfg.n), (0, cfg.d_in_p - cfg.d_in)))

    weight_bytes = sum(int(a.size) * a.dtype.itemsize for a in (w1, b1, w2, b2))
    flops = 2 * cfg.n_pad * (cfg.d_in_p * cfg.h_p + cfg.h_p * cfg.d_out_p)
    bytes_accessed = (cfg.n_pad * cfg.d_in_p * stream_dtype.itemsize
                      + cfg.n_pad * cfg.d_out_p * out_dtype.itemsize
                      + weight_bytes)
    cost = pl.CostEstimate(flops=int(flops), transcendentals=0,
                           bytes_accessed=int(bytes_accessed))

    if cfg.tk == 0:
        # Resident weights (constant index_map -> loaded once, stay in VMEM),
        # batch-streamed x/out tiles, megacore over the batch axis.
        out = pl.pallas_call(
            _resident_kernel,
            out_shape=jax.ShapeDtypeStruct((cfg.n_pad, cfg.d_out_p), out_dtype),
            grid=(cfg.n_pad // cfg.tm,),
            in_specs=[
                pl.BlockSpec((cfg.tm, cfg.d_in_p), lambda i: (i, 0)),
                pl.BlockSpec((cfg.d_in_p, cfg.h_p), lambda i: (0, 0)),
                pl.BlockSpec((1, cfg.h_p), lambda i: (0, 0)),
                pl.BlockSpec((cfg.h_p, cfg.d_out_p), lambda i: (0, 0)),
                pl.BlockSpec((1, cfg.d_out_p), lambda i: (0, 0)),
            ],
            out_specs=pl.BlockSpec((cfg.tm, cfg.d_out_p), lambda i: (i, 0)),
            compiler_params=pltpu.CompilerParams(
                dimension_semantics=("parallel",),
                vmem_limit_bytes=cfg.vmem_limit),
            cost_estimate=cost,
        )(x, w1, b1, w2, b2)
    else:
        # K-tiled fallback: stream W1 column-panels / W2 row-panels over an
        # "arbitrary" H axis, accumulate into an f32 VMEM scratch.
        out = pl.pallas_call(
            _ktiled_kernel,
            out_shape=jax.ShapeDtypeStruct((cfg.n_pad, cfg.d_out_p), out_dtype),
            grid=(cfg.n_pad // cfg.tm, cfg.h_p // cfg.tk),
            in_specs=[
                pl.BlockSpec((cfg.tm, cfg.d_in_p), lambda i, j: (i, 0)),
                pl.BlockSpec((cfg.d_in_p, cfg.tk), lambda i, j: (0, j)),
                pl.BlockSpec((1, cfg.tk), lambda i, j: (0, j)),
                pl.BlockSpec((cfg.tk, cfg.d_out_p), lambda i, j: (j, 0)),
                pl.BlockSpec((1, cfg.d_out_p), lambda i, j: (0, 0)),
            ],
            out_specs=pl.BlockSpec((cfg.tm, cfg.d_out_p), lambda i, j: (i, 0)),
            scratch_shapes=[pltpu.VMEM((cfg.tm, cfg.d_out_p), jnp.float32)],
            compiler_params=pltpu.CompilerParams(
                dimension_semantics=("parallel", "arbitrary"),
                vmem_limit_bytes=cfg.vmem_limit),
            cost_estimate=cost,
        )(x, w1, b1, w2, b2)

    if cfg.n_pad != cfg.n or cfg.d_out_p != cfg.d_out:
        out = out[:cfg.n, :cfg.d_out]      # static Python ints -> static slice
    return out


def two_layers_net(x, params, *, vmem_budget_bytes=None):
    """x: [N, D_in]; params from prepare_params. Returns [N, D_out].

    NOTE: call this un-jitted (it does host-side tile selection); the heavy
    lifting is inside the jitted `_forward`.
    """
    n, d_in = x.shape
    assert d_in == params["d_in"], "input width mismatch with prepared params"
    w1, b1, w2, b2 = params["w1"], params["b1"], params["w2"], params["b2"]
    d_in_p, h_p = w1.shape
    d_out_p = w2.shape[1]

    compute_dtype = np.dtype(params["compute_dtype"])
    stream_dtype = compute_dtype                 # stream x in MXU operand dtype
    out_dtype = (np.dtype(params["out_dtype"]) if params["out_dtype"]
                 else np.dtype(x.dtype))

    budget, vmem_limit = _vmem_budget()
    if vmem_budget_bytes is not None:            # override / test hook
        budget = int(vmem_budget_bytes)

    tm, tk = _choose_tiling(n, d_in_p, h_p, d_out_p,
                            stream_dtype.itemsize, compute_dtype.itemsize,
                            out_dtype.itemsize, budget)
    n_pad = _round_up(max(n, tm), tm)

    cfg = _Cfg(n=n, d_in=d_in, d_out=params["d_out"],
               d_in_p=d_in_p, h_p=h_p, d_out_p=d_out_p,
               tm=tm, tk=tk, n_pad=n_pad,
               stream_dtype=stream_dtype.name, out_dtype=out_dtype.name,
               vmem_limit=vmem_limit)
    return _forward(x, w1, b1, w2, b2, cfg=cfg)


def _reference(x, w1, b1, w2, b2):
    p = jax.lax.Precision.HIGHEST
    h = jnp.maximum(jnp.dot(x, w1.T, precision=p) + b1, 0.0)
    return jnp.dot(h, w2.T, precision=p) + b2


# ---------------------------------------------------------------------------
# Test
# ---------------------------------------------------------------------------
if __name__ == "__main__":
    def make(key, n, d_in, h_dim, d_out):
        kx, kw1, kb1, kw2, kb2 = jax.random.split(key, 5)
        x = jax.random.normal(kx, (n, d_in), dtype=jnp.float32)
        b1l = 1.0 / (d_in ** 0.5)
        w1 = jax.random.uniform(kw1, (h_dim, d_in), minval=-b1l, maxval=b1l)
        b1 = jax.random.uniform(kb1, (h_dim,), minval=-b1l, maxval=b1l)
        b2l = 1.0 / (h_dim ** 0.5)
        w2 = jax.random.uniform(kw2, (d_out, h_dim), minval=-b2l, maxval=b2l)
        b2 = jax.random.uniform(kb2, (d_out,), minval=-b2l, maxval=b2l)
        return x, w1, b1, w2, b2

    key = jax.random.PRNGKey(0)
    k1, k2 = jax.random.split(key)

    # --- small shapes from the module: N=8, D_in=32, H=64, D_out=16 ----------
    x, w1, b1, w2, b2 = make(k1, 8, 32, 64, 16)

    params_f32 = prepare_params(w1, b1, w2, b2, compute_dtype=jnp.float32)
    y = jax.block_until_ready(two_layers_net(x, params_f32))
    y_ref = _reference(x, w1, b1, w2, b2)
    assert y.shape == (8, 16) and y.dtype == x.dtype
    assert jnp.allclose(y, y_ref, atol=1e-3, rtol=1e-3), \
        float(jnp.max(jnp.abs(y - y_ref)))

    # --- bf16 MXU-operand path (x streamed as bf16, f32 accumulate) ----------
    params_bf16 = prepare_params(w1, b1, w2, b2, compute_dtype=jnp.bfloat16)
    y_bf = jax.block_until_ready(two_layers_net(x, params_bf16))
    xb = x.astype(jnp.bfloat16).astype(jnp.float32)
    w1b = w1.astype(jnp.bfloat16).astype(jnp.float32)
    w2b = w2.astype(jnp.bfloat16).astype(jnp.float32)
    y_ref_bf = _reference(xb, w1b, b1, w2b, b2)
    assert jnp.allclose(y_bf, y_ref_bf, atol=2e-2, rtol=2e-2)

    # --- K-tiled fallback (forced via a tiny VMEM budget) --------------------
    xm, w1m, b1m, w2m, b2m = make(k2, 64, 256, 1024, 128)
    tm_sel, tk_sel = _choose_tiling(64, 256, 1024, 128, 4, 4, 4, 1 << 20)
    assert tk_sel > 0, "forced budget should exercise the K-tiled fallback"
    params_m = prepare_params(w1m, b1m, w2m, b2m, compute_dtype=jnp.float32)
    y_m = jax.block_until_ready(
        two_layers_net(xm, params_m, vmem_budget_bytes=1 << 20))
    y_m_ref = _reference(xm, w1m, b1m, w2m, b2m)
    assert y_m.shape == (64, 128)
    assert jnp.allclose(y_m, y_m_ref, atol=1e-3, rtol=1e-3), \
        float(jnp.max(jnp.abs(y_m - y_m_ref)))

    print("KERNEL_OK")
</pallas_src>

<mosaic_0001>
module attributes {stable_mosaic.version = 11 : i64} {
  func.func @_resident_kernel(%arg0: i32, %arg1: memref<8x128xf32, #tpu.memory_space<vmem>>, %arg2: memref<128x128xf32, #tpu.memory_space<vmem>>, %arg3: memref<1x128xf32, #tpu.memory_space<vmem>>, %arg4: memref<128x128xf32, #tpu.memory_space<vmem>>, %arg5: memref<1x128xf32, #tpu.memory_space<vmem>>, %arg6: memref<8x128xf32, #tpu.memory_space<vmem>>) attributes {dimension_semantics = [#tpu.dimension_semantics<parallel>], iteration_bounds = array<i64: 1>, scalar_prefetch = 0 : i64, scratch_operands = 0 : i64, tpu.core_type = #tpu.core_type<tc>, window_params = [{transform_indices = @transform_0, window_bounds = array<i64: 8, 128>}, {pipeline_mode = #tpu.pipeline_mode<synchronous>, transform_indices = @transform_1, window_bounds = array<i64: 128, 128>}, {pipeline_mode = #tpu.pipeline_mode<synchronous>, transform_indices = @transform_2, window_bounds = array<i64: 1, 128>}, {pipeline_mode = #tpu.pipeline_mode<synchronous>, transform_indices = @transform_3, window_bounds = array<i64: 128, 128>}, {pipeline_mode = #tpu.pipeline_mode<synchronous>, transform_indices = @transform_4, window_bounds = array<i64: 1, 128>}, {transform_indices = @transform_5, window_bounds = array<i64: 8, 128>}]} {
    %c0 = arith.constant 0 : index
    %c0_0 = arith.constant 0 : index
    %0 = vector.load %arg2[%c0, %c0_0] : memref<128x128xf32, #tpu.memory_space<vmem>>, vector<128x128xf32>
    %c0_1 = arith.constant 0 : index
    %c0_2 = arith.constant 0 : index
    %1 = vector.load %arg4[%c0_1, %c0_2] : memref<128x128xf32, #tpu.memory_space<vmem>>, vector<128x128xf32>
    %c0_3 = arith.constant 0 : index
    %c0_4 = arith.constant 0 : index
    %2 = vector.load %arg1[%c0_3, %c0_4] : memref<8x128xf32, #tpu.memory_space<vmem>>, vector<8x128xf32>
    %cst = arith.constant dense<0.000000e+00> : vector<8x128xf32>
    %3 = tpu.matmul %2, %0, %cst {dimension_numbers = #tpu.dot_dimension_numbers<[1], [0], [0], [1], [0, 0, 1, 1], [], []>, precision = #tpu.contract_precision<fp32>} : vector<8x128xf32>, vector<128x128xf32>, vector<8x128xf32> -> vector<8x128xf32>
    %c0_5 = arith.constant 0 : index
    %c0_6 = arith.constant 0 : index
    %4 = vector.load %arg3[%c0_5, %c0_6] : memref<1x128xf32, #tpu.memory_space<vmem>>, vector<1x128xf32>
    %5 = vector.broadcast %4 : vector<1x128xf32> to vector<8x128xf32>
    %6 = arith.addf %3, %5 : vector<8x128xf32>
    %cst_7 = arith.constant 0.000000e+00 : f32
    %7 = vector.broadcast %cst_7 : f32 to vector<8x128xf32>
    %8 = arith.maximumf %6, %7 : vector<8x128xf32>
    %cst_8 = arith.constant dense<0.000000e+00> : vector<8x128xf32>
    %9 = tpu.matmul %8, %1, %cst_8 {dimension_numbers = #tpu.dot_dimension_numbers<[1], [0], [0], [1], [0, 0, 1, 1], [], []>, precision = #tpu.contract_precision<fp32>} : vector<8x128xf32>, vector<128x128xf32>, vector<8x128xf32> -> vector<8x128xf32>
    %c0_9 = arith.constant 0 : index
    %c0_10 = arith.constant 0 : index
    %10 = vector.load %arg5[%c0_9, %c0_10] : memref<1x128xf32, #tpu.memory_space<vmem>>, vector<1x128xf32>
    %11 = vector.broadcast %10 : vector<1x128xf32> to vector<8x128xf32>
    %12 = arith.addf %9, %11 : vector<8x128xf32>
    %c0_11 = arith.constant 0 : index
    %c0_12 = arith.constant 0 : index
    %13 = vector.load %arg6[%c0_11, %c0_12] : memref<8x128xf32, #tpu.memory_space<vmem>>, vector<8x128xf32>
    tpu.vector_store %arg6[%c0_11, %c0_12], %12 {strides = array<i32>} : memref<8x128xf32, #tpu.memory_space<vmem>>, vector<8x128xf32>,
    return
  }
  func.func @transform_0(%arg0: i32) -> (i32, i32) {
    %c0_i32 = arith.constant 0 : i32
    %c0_i32_0 = arith.constant 0 : i32
    return %arg0, %c0_i32 : i32, i32
  }
  func.func @transform_1(%arg0: i32) -> (i32, i32) {
    %c0_i32 = arith.constant 0 : i32
    %c0_i32_0 = arith.constant 0 : i32
    %c0_i32_1 = arith.constant 0 : i32
    return %c0_i32, %c0_i32_0 : i32, i32
  }
  func.func @transform_2(%arg0: i32) -> (i32, i32) {
    %c0_i32 = arith.constant 0 : i32
    %c0_i32_0 = arith.constant 0 : i32
    %c0_i32_1 = arith.constant 0 : i32
    return %c0_i32, %c0_i32_0 : i32, i32
  }
  func.func @transform_3(%arg0: i32) -> (i32, i32) {
    %c0_i32 = arith.constant 0 : i32
    %c0_i32_0 = arith.constant 0 : i32
    %c0_i32_1 = arith.constant 0 : i32
    return %c0_i32, %c0_i32_0 : i32, i32
  }
  func.func @transform_4(%arg0: i32) -> (i32, i32) {
    %c0_i32 = arith.constant 0 : i32
    %c0_i32_0 = arith.constant 0 : i32
    %c0_i32_1 = arith.constant 0 : i32
    return %c0_i32, %c0_i32_0 : i32, i32
  }
  func.func @transform_5(%arg0: i32) -> (i32, i32) {
    %c0_i32 = arith.constant 0 : i32
    %c0_i32_0 = arith.constant 0 : i32
    return %arg0, %c0_i32 : i32, i32
  }
}

</mosaic_0001>

<llo_original>
// kernel: _forward.1
$region0: #{_forward.1}
  #allocation0 [shape = 'u32[]', space=smem, size = 0x4, offset = 0x4, fixed_abs, tag = 'smem constant byte address 0x4 - core index']
  #allocation1 [shape = 'u32[144,128]{1,0:T(1,128)}', space=vmem, size = 0x12000, scoped, tag = 'internal scratch']
  %s0 = inlined_call_operand.vmem [shape: f32[8,128], index: 0, kind: input, shape index: {}]
  %s1 = inlined_call_operand.hbm [shape: f32[128,128], index: 1, kind: input, shape index: {}]
  %s2 = inlined_call_operand.vmem [shape: f32[1,128], index: 2, kind: input, shape index: {}]
  %s3 = inlined_call_operand.hbm [shape: f32[128,128], index: 3, kind: input, shape index: {}]
  %s4 = inlined_call_operand.vmem [shape: f32[1,128], index: 4, kind: input, shape index: {}]
  %s5 = inlined_call_operand.hbm [shape: f32[8,128], index: 5, kind: output, shape index: {}]
  %s6 = sld [smem:[#allocation0]]
  $region38: #{_forward.1} parent=0
    _
  %s8 = ssub.s32 1, %s6
  %s9 = scalar_select 0, %s8, %s6
  $region1: #{_forward.1} parent=0
    #allocation2 [shape = 'u8[65536]{0}', space=vmem, size = 0x10000, scoped, tag = 'input window, operand 1, single buffered']
    #allocation3 [shape = 's32[1]{0}', space=sflag, size = 0x4, scoped, tag = 'scoped memory for _forward.1']
    #allocation4 [shape = 's32[1]{0}', space=sflag, size = 0x4, scoped, tag = 'scoped memory for _forward.1']
    #allocation5 [shape = 'u8[65536]{0}', space=vmem, size = 0x10000, scoped, tag = 'input window, operand 3, single buffered']
    #allocation6 [shape = 's32[1]{0}', space=sflag, size = 0x4, scoped, tag = 'scoped memory for _forward.1']
    #allocation7 [shape = 'u8[4096]{0}', space=vmem, size = 0x1000, scoped, tag = 'output window, operand 0, single buffered']
    %10 = vsyncpa [#allocation3], 0
    %11 = vsyncpa [#allocation6], 0
    %12 = vsyncpa [#allocation4], 0
    // Predicated region
    $region2: #{_forward.1} parent=1 // pred_check
      _
    $region3: #{_forward.1} parent=1 // pred_check_branch
      %14 = sbr.rel (0) target = $region5
    $region4: #{_forward.1} parent=1 // pred_region
      _
    $region5: #{_forward.1} parent=1 // pred_fallthru
      _
    // Predicated region
    $region6: #{_forward.1} parent=1 // pred_check
      _
    $region7: #{_forward.1} parent=1 // pred_check_branch
      %16 = sbr.rel (0) target = $region9
    $region8: #{_forward.1} parent=1 // pred_region
      %s18 = ssub.s32 2048, 2048
      %19 = vsyncadd [#allocation3], %s18
      %s20 = sshll.u32 [#allocation2], 4
      %s21 = int_to_ptr.vmem [resolvable:$true] %s20
      %26 = dma.hbm_to_vmem [thread:$0]  %s1, 2048, %s21, [#allocation3], 128, 128, 8
    $region9: #{_forward.1} parent=1 // pred_fallthru
      _
    // Predicated region
    $region10: #{_forward.1} parent=1 // pred_check
      _
    $region11: #{_forward.1} parent=1 // pred_check_branch
      %28 = sbr.rel (0) target = $region13
    $region12: #{_forward.1} parent=1 // pred_region
      _
    $region13: #{_forward.1} parent=1 // pred_fallthru
      _
    // Predicated region
    $region14: #{_forward.1} parent=1 // pred_check
      _
    $region15: #{_forward.1} parent=1 // pred_check_branch
      %30 = sbr.rel (0) target = $region17
    $region16: #{_forward.1} parent=1 // pred_region
      %s32 = ssub.s32 2048, 2048
      %33 = vsyncadd [#allocation6], %s32
      %s34 = sshll.u32 [#allocation5], 4
      %s35 = int_to_ptr.vmem [resolvable:$true] %s34
      %40 = dma.hbm_to_vmem [thread:$0]  %s3, 2048, %s35, [#allocation6], 128, 128, 8
    $region17: #{_forward.1} parent=1 // pred_fallthru
      _
    // Predicated region
    $region18: #{_forward.1} parent=1 // pred_check
      _
    $region19: #{_forward.1} parent=1 // pred_check_branch
      %42 = sbr.rel (0) target = $region21
    $region20: #{_forward.1} parent=1 // pred_region
      _
    $region21: #{_forward.1} parent=1 // pred_fallthru
      _
    // Predicated region
    $region22: #{_forward.1} parent=1 // pred_check
      _
    $region23: #{_forward.1} parent=1 // pred_check_branch
      %44 = sbr.rel (0) target = $region25
    $region24: #{_forward.1} parent=1 // pred_region
      %45 = dma.done [#allocation3], 2048
    $region25: #{_forward.1} parent=1 // pred_fallthru
      _
    // Predicated region
    $region26: #{_forward.1} parent=1 // pred_check
      _
    $region27: #{_forward.1} parent=1 // pred_check_branch
      %47 = sbr.rel (0) target = $region29
    $region28: #{_forward.1} parent=1 // pred_region
      %48 = dma.done [#allocation6], 2048
    $region29: #{_forward.1} parent=1 // pred_fallthru
      _
    %v49 = vld [vmem:[#allocation2] sm:$0xff]
    %v50 = vld [vmem:[#allocation2 + $0x8] sm:$0xff]
    %v51 = vld [vmem:[#allocation2 + $0x10] sm:$0xff]
    %v52 = vld [vmem:[#allocation2 + $0x18] sm:$0xff]
    %v53 = vld [vmem:[#allocation2 + $0x20] sm:$0xff]
    %v54 = vld [vmem:[#allocation2 + $0x28] sm:$0xff]
    %v55 = vld [vmem:[#allocation2 + $0x30] sm:$0xff]
    %v56 = vld [vmem:[#allocation2 + $0x38] sm:$0xff]
    %v57 = vld [vmem:[#allocation2 + $0x40] sm:$0xff]
    %v58 = vld [vmem:[#allocation2 + $0x48] sm:$0xff]
    %v59 = vld [vmem:[#allocation2 + $0x50] sm:$0xff]
    %v60 = vld [vmem:[#allocation2 + $0x58] sm:$0xff]
    %v61 = vld [vmem:[#allocation2 + $0x60] sm:$0xff]
    %v62 = vld [vmem:[#allocation2 + $0x68] sm:$0xff]
    %v63 = vld [vmem:[#allocation2 + $0x70] sm:$0xff]
    %v64 = vld [vmem:[#allocation2 + $0x78] sm:$0xff]
    %v65 = vld [vmem:[#allocation5] sm:$0xff]
    %v66 = vld [vmem:[#allocation5 + $0x8] sm:$0xff]
    %v67 = vld [vmem:[#allocation5 + $0x10] sm:$0xff]
    %v68 = vld [vmem:[#allocation5 + $0x18] sm:$0xff]
    %v69 = vld [vmem:[#allocation5 + $0x20] sm:$0xff]
    %v70 = vld [vmem:[#allocation5 + $0x28] sm:$0xff]
    %v71 = vld [vmem:[#allocation5 + $0x30] sm:$0xff]
    %v72 = vld [vmem:[#allocation5 + $0x38] sm:$0xff]
    %v73 = vld [vmem:[#allocation5 + $0x40] sm:$0xff]
    %v74 = vld [vmem:[#allocation5 + $0x48] sm:$0xff]
    %v75 = vld [vmem:[#allocation5 + $0x50] sm:$0xff]
    %v76 = vld [vmem:[#allocation5 + $0x58] sm:$0xff]
    %v77 = vld [vmem:[#allocation5 + $0x60] sm:$0xff]
    %v78 = vld [vmem:[#allocation5 + $0x68] sm:$0xff]
    %v79 = vld [vmem:[#allocation5 + $0x70] sm:$0xff]
    %v80 = vld [vmem:[#allocation5 + $0x78] sm:$0xff]
    %v81 = vld [vmem:[%s0] sm:$0xff]
    %v82 = vld [vmem:[%s2] sm:$0x1]
    %v84 = vlaneseq
    %v85 = vshrl.u32 %v84, 7
    %v86 = vsub.s32 0, %v85
    %v87 = vrot.slane %v82, %v86
    %89 = vmatprep.subr.mxu0 0.0
    %v90 = vand.u32 %v49, 4294901760
    %91 = vmatpush1.msra.mxu0 %v90
    %92 = vmatprep.subr.mxu0 0.0
    %v93 = vand.u32 %v50, 4294901760
    %94 = vmatpush1.msra.mxu0 %v93
    %95 = vmatprep.subr.mxu0 0.0
    %v96 = vand.u32 %v51, 4294901760
    %97 = vmatpush1.msra.mxu0 %v96
    %98 = vmatprep.subr.mxu0 0.0
    %v99 = vand.u32 %v52, 4294901760
    %100 = vmatpush1.msra.mxu0 %v99
    %101 = vmatprep.subr.mxu0 0.0
    %v102 = vand.u32 %v53, 4294901760
    %103 = vmatpush1.msra.mxu0 %v102
    %104 = vmatprep.subr.mxu0 0.0
    %v105 = vand.u32 %v54, 4294901760
    %106 = vmatpush1.msra.mxu0 %v105
    %107 = vmatprep.subr.mxu0 0.0
    %v108 = vand.u32 %v55, 4294901760
    %109 = vmatpush1.msra.mxu0 %v108
    %110 = vmatprep.subr.mxu0 0.0
    %v111 = vand.u32 %v56, 4294901760
    %112 = vmatpush1.msra.mxu0 %v111
    %113 = vmatprep.subr.mxu0 0.0
    %v114 = vand.u32 %v57, 4294901760
    %115 = vmatpush1.msra.mxu0 %v114
    %116 = vmatprep.subr.mxu0 0.0
    %v117 = vand.u32 %v58, 4294901760
    %118 = vmatpush1.msra.mxu0 %v117
    %119 = vmatprep.subr.mxu0 0.0
    %v120 = vand.u32 %v59, 4294901760
    %121 = vmatpush1.msra.mxu0 %v120
    %122 = vmatprep.subr.mxu0 0.0
    %v123 = vand.u32 %v60, 4294901760
    %124 = vmatpush1.msra.mxu0 %v123
    %125 = vmatprep.subr.mxu0 0.0
    %v126 = vand.u32 %v61, 4294901760
    %127 = vmatpush1.msra.mxu0 %v126
    %128 = vmatprep.subr.mxu0 0.0
    %v129 = vand.u32 %v62, 4294901760
    %130 = vmatpush1.msra.mxu0 %v129
    %131 = vmatprep.subr.mxu0 0.0
    %v132 = vand.u32 %v63, 4294901760
    %133 = vmatpush1.msra.mxu0 %v132
    %134 = vmatprep.subr.mxu0 0.0
    %v135 = vand.u32 %v64, 4294901760
    %136 = vmatpush1.msra.mxu0 %v135
    %137 = vmatprep.subr.mxu0 0.0
    %138 = vmatpush1.msra.mxu0 0.0
    %139 = vmatprep.subr.mxu0 0.0
    %140 = vmatpush1.msra.mxu0 0.0
    %141 = vmatprep.subr.mxu0 0.0
    %142 = vmatpush1.msra.mxu0 0.0
    %143 = vmatprep.subr.mxu0 0.0
    %144 = vmatpush1.msra.mxu0 0.0
    %145 = vmatprep.subr.mxu0 0.0
    %146 = vmatpush1.msra.mxu0 0.0
    %147 = vmatprep.subr.mxu0 0.0
    %148 = vmatpush1.msra.mxu0 0.0
    %149 = vmatprep.subr.mxu0 0.0
    %150 = vmatpush1.msra.mxu0 0.0
    %151 = vmatprep.subr.mxu0 0.0
    %152 = vmatpush1.msra.mxu0 0.0
    %153 = vmatprep.subr.mxu0 0.0
    %154 = vmatpush1.msra.mxu0 0.0
    %155 = vmatprep.subr.mxu0 0.0
    %156 = vmatpush1.msra.mxu0 0.0
    %157 = vmatprep.subr.mxu0 0.0
    %158 = vmatpush1.msra.mxu0 0.0
    %159 = vmatprep.subr.mxu0 0.0
    %160 = vmatpush1.msra.mxu0 0.0
    %161 = vmatprep.subr.mxu0 0.0
    %162 = vmatpush1.msra.mxu0 0.0
    %163 = vmatprep.subr.mxu0 0.0
    %164 = vmatpush1.msra.mxu0 0.0
    %165 = vmatprep.subr.mxu0 0.0
    %166 = vmatpush1.msra.mxu0 0.0
    %167 = vmatprep.subr.mxu0 0.0
    %168 = vmatpush1.msra.mxu0 0.0
    %169 = vmatprep.mubr.f32.mxu0 0.0
    %v170 = vand.u32 %v81, 4294901760
    %v171 = vsub.f32 %v81, %v170
    %v172 = vand.u32 %v171, 4294901760
    %v173 = vsub.f32 %v171, %v172
    %v174 = vand.u32 %v173, 4294901760
    %175 = vmatmul.mubr.f32.gmra.mrb[0].mxu0 %v174
    %v176 = vpop.f32.mrb[0].mxu0
    %v177 = vadd.f32 %v87, %v176
    %v178 = vpop.f32.mrb[0].mxu0
    %179 = vdwg.mxu0
    %180 = vmatprep.subr.mxu0 0.0
    %v181 = vand.u32 %v49, 4294901760
    %v182 = vsub.f32 %v49, %v181
    %v183 = vand.u32 %v182, 4294901760
    %v184 = vsub.f32 %v182, %v183
    %v185 = vand.u32 %v184, 4294901760
    %186 = vmatpush1.msra.mxu0 %v185
    %187 = vmatprep.subr.mxu0 0.0
    %v188 = vand.u32 %v50, 4294901760
    %v189 = vsub.f32 %v50, %v188
    %v190 = vand.u32 %v189, 4294901760
    %v191 = vsub.f32 %v189, %v190
    %v192 = vand.u32 %v191, 4294901760
    %193 = vmatpush1.msra.mxu0 %v192
    %194 = vmatprep.subr.mxu0 0.0
    %v195 = vand.u32 %v51, 4294901760
    %v196 = vsub.f32 %v51, %v195
    %v197 = vand.u32 %v196, 4294901760
    %v198 = vsub.f32 %v196, %v197
    %v199 = vand.u32 %v198, 4294901760
    %200 = vmatpush1.msra.mxu0 %v199
    %201 = vmatprep.subr.mxu0 0.0
    %v202 = vand.u32 %v52, 4294901760
    %v203 = vsub.f32 %v52, %v202
    %v204 = vand.u32 %v203, 4294901760
    %v205 = vsub.f32 %v203, %v204
    %v206 = vand.u32 %v205, 4294901760
    %207 = vmatpush1.msra.mxu0 %v206
    %208 = vmatprep.subr.mxu0 0.0
    %v209 = vand.u32 %v53, 4294901760
    %v210 = vsub.f32 %v53, %v209
    %v211 = vand.u32 %v210, 4294901760
    %v212 = vsub.f32 %v210, %v211
    %v213 = vand.u32 %v212, 4294901760
    %214 = vmatpush1.msra.mxu0 %v213
    %215 = vmatprep.subr.mxu0 0.0
    %v216 = vand.u32 %v54, 4294901760
    %v217 = vsub.f32 %v54, %v216
    %v218 = vand.u32 %v217, 4294901760
    %v219 = vsub.f32 %v217, %v218
    %v220 = vand.u32 %v219, 4294901760
    %221 = vmatpush1.msra.mxu0 %v220
    %222 = vmatprep.subr.mxu0 0.0
    %v223 = vand.u32 %v55, 4294901760
    %v224 = vsub.f32 %v55, %v223
    %v225 = vand.u32 %v224, 4294901760
    %v226 = vsub.f32 %v224, %v225
    %v227 = vand.u32 %v226, 4294901760
    %228 = vmatpush1.msra.mxu0 %v227
    %229 = vmatprep.subr.mxu0 0.0
    %v230 = vand.u32 %v56, 4294901760
    %v231 = vsub.f32 %v56, %v230
    %v232 = vand.u32 %v231, 4294901760
    %v233 = vsub.f32 %v231, %v232
    %v234 = vand.u32 %v233, 4294901760
    %235 = vmatpush1.msra.mxu0 %v234
    %236 = vmatprep.subr.mxu0 0.0
    %v237 = vand.u32 %v57, 4294901760
    %v238 = vsub.f32 %v57, %v237
    %v239 = vand.u32 %v238, 4294901760
    %v240 = vsub.f32 %v238, %v239
    %v241 = vand.u32 %v240, 4294901760
    %242 = vmatpush1.msra.mxu0 %v241
    %243 = vmatprep.subr.mxu0 0.0
    %v244 = vand.u32 %v58, 4294901760
    %v245 = vsub.f32 %v58, %v244
    %v246 = vand.u32 %v245, 4294901760
    %v247 = vsub.f32 %v245, %v246
    %v248 = vand.u32 %v247, 4294901760
    %249 = vmatpush1.msra.mxu0 %v248
    %250 = vmatprep.subr.mxu0 0.0
    %v251 = vand.u32 %v59, 4294901760
    %v252 = vsub.f32 %v59, %v251
    %v253 = vand.u32 %v252, 4294901760
    %v254 = vsub.f32 %v252, %v253
    %v255 = vand.u32 %v254, 4294901760
    %256 = vmatpush1.msra.mxu0 %v255
    %257 = vmatprep.subr.mxu0 0.0
    %v258 = vand.u32 %v60, 4294901760
    %v259 = vsub.f32 %v60, %v258
    %v260 = vand.u32 %v259, 4294901760
    %v261 = vsub.f32 %v259, %v260
    %v262 = vand.u32 %v261, 4294901760
    %263 = vmatpush1.msra.mxu0 %v262
    %264 = vmatprep.subr.mxu0 0.0
    %v265 = vand.u32 %v61, 4294901760
    %v266 = vsub.f32 %v61, %v265
    %v267 = vand.u32 %v266, 4294901760
    %v268 = vsub.f32 %v266, %v267
    %v269 = vand.u32 %v268, 4294901760
    %270 = vmatpush1.msra.mxu0 %v269
    %271 = vmatprep.subr.mxu0 0.0
    %v272 = vand.u32 %v62, 4294901760
    %v273 = vsub.f32 %v62, %v272
    %v274 = vand.u32 %v273, 4294901760
    %v275 = vsub.f32 %v273, %v274
    %v276 = vand.u32 %v275, 4294901760
    %277 = vmatpush1.msra.mxu0 %v276
    %278 = vmatprep.subr.mxu0 0.0
    %v279 = vand.u32 %v63, 4294901760
    %v280 = vsub.f32 %v63, %v279
    %v281 = vand.u32 %v280, 4294901760
    %v282 = vsub.f32 %v280, %v281
    %v283 = vand.u32 %v282, 4294901760
    %284 = vmatpush1.msra.mxu0 %v283
    %285 = vmatprep.subr.mxu0 0.0
    %v286 = vand.u32 %v64, 4294901760
    %v287 = vsub.f32 %v64, %v286
    %v288 = vand.u32 %v287, 4294901760
    %v289 = vsub.f32 %v287, %v288
    %v290 = vand.u32 %v289, 4294901760
    %291 = vmatpush1.msra.mxu0 %v290
    %292 = vmatprep.subr.mxu0 0.0
    %293 = vmatpush1.msra.mxu0 0.0
    %294 = vmatprep.subr.mxu0 0.0
    %295 = vmatpush1.msra.mxu0 0.0
    %296 = vmatprep.subr.mxu0 0.0
    %297 = vmatpush1.msra.mxu0 0.0
    %298 = vmatprep.subr.mxu0 0.0
    %299 = vmatpush1.msra.mxu0 0.0
    %300 = vmatprep.subr.mxu0 0.0
    %301 = vmatpush1.msra.mxu0 0.0
    %302 = vmatprep.subr.mxu0 0.0
    %303 = vmatpush1.msra.mxu0 0.0
    %304 = vmatprep.subr.mxu0 0.0
    %305 = vmatpush1.msra.mxu0 0.0
    %306 = vmatprep.subr.mxu0 0.0
    %307 = vmatpush1.msra.mxu0 0.0
    %308 = vmatprep.subr.mxu0 0.0
    %309 = vmatpush1.msra.mxu0 0.0
    %310 = vmatprep.subr.mxu0 0.0
    %311 = vmatpush1.msra.mxu0 0.0
    %312 = vmatprep.subr.mxu0 0.0
    %313 = vmatpush1.msra.mxu0 0.0
    %314 = vmatprep.subr.mxu0 0.0
    %315 = vmatpush1.msra.mxu0 0.0
    %316 = vmatprep.subr.mxu0 0.0
    %317 = vmatpush1.msra.mxu0 0.0
    %318 = vmatprep.subr.mxu0 0.0
    %319 = vmatpush1.msra.mxu0 0.0
    %320 = vmatprep.subr.mxu0 0.0
    %321 = vmatpush1.msra.mxu0 0.0
    %322 = vmatprep.subr.mxu0 0.0
    %323 = vmatpush1.msra.mxu0 0.0
    %324 = vmatprep.mubr.f32.mxu0 0.0
    %v325 = vand.u32 %v81, 4294901760
    %326 = vmatmul.mubr.f32.gmra.mrb[0].mxu0 %v325
    %v327 = vpop.f32.mrb[0].mxu0
    %v328 = vadd.f32 %v177, %v327
    %v329 = vpop.f32.mrb[0].mxu0
    %330 = vdwg.mxu0
    %331 = vmatprep.subr.mxu0 0.0
    %v332 = vand.u32 %v49, 4294901760
    %v333 = vsub.f32 %v49, %v332
    %334 = vmatpush1.msra.mxu0 %v333
    %335 = vmatprep.subr.mxu0 0.0
    %v336 = vand.u32 %v50, 4294901760
    %v337 = vsub.f32 %v50, %v336
    %338 = vmatpush1.msra.mxu0 %v337
    %339 = vmatprep.subr.mxu0 0.0
    %v340 = vand.u32 %v51, 4294901760
    %v341 = vsub.f32 %v51, %v340
    %342 = vmatpush1.msra.mxu0 %v341
    %343 = vmatprep.subr.mxu0 0.0
    %v344 = vand.u32 %v52, 4294901760
    %v345 = vsub.f32 %v52, %v344
    %346 = vmatpush1.msra.mxu0 %v345
    %347 = vmatprep.subr.mxu0 0.0
    %v348 = vand.u32 %v53, 4294901760
    %v349 = vsub.f32 %v53, %v348
    %350 = vmatpush1.msra.mxu0 %v349
    %351 = vmatprep.subr.mxu0 0.0
    %v352 = vand.u32 %v54, 4294901760
    %v353 = vsub.f32 %v54, %v352
    %354 = vmatpush1.msra.mxu0 %v353
    %355 = vmatprep.subr.mxu0 0.0
    %v356 = vand.u32 %v55, 4294901760
    %v357 = vsub.f32 %v55, %v356
    %358 = vmatpush1.msra.mxu0 %v357
    %359 = vmatprep.subr.mxu0 0.0
    %v360 = vand.u32 %v56, 4294901760
    %v361 = vsub.f32 %v56, %v360
    %362 = vmatpush1.msra.mxu0 %v361
    %363 = vmatprep.subr.mxu0 0.0
    %v364 = vand.u32 %v57, 4294901760
    %v365 = vsub.f32 %v57, %v364
    %366 = vmatpush1.msra.mxu0 %v365
    %367 = vmatprep.subr.mxu0 0.0
    %v368 = vand.u32 %v58, 4294901760
    %v369 = vsub.f32 %v58, %v368
    %370 = vmatpush1.msra.mxu0 %v369
    %371 = vmatprep.subr.mxu0 0.0
    %v372 = vand.u32 %v59, 4294901760
    %v373 = vsub.f32 %v59, %v372
    %374 = vmatpush1.msra.mxu0 %v373
    %375 = vmatprep.subr.mxu0 0.0
    %v376 = vand.u32 %v60, 4294901760
    %v377 = vsub.f32 %v60, %v376
    %378 = vmatpush1.msra.mxu0 %v377
    %379 = vmatprep.subr.mxu0 0.0
    %v380 = vand.u32 %v61, 4294901760
    %v381 = vsub.f32 %v61, %v380
    %382 = vmatpush1.msra.mxu0 %v381
    %383 = vmatprep.subr.mxu0 0.0
    %v384 = vand.u32 %v62, 4294901760
    %v385 = vsub.f32 %v62, %v384
    %386 = vmatpush1.msra.mxu0 %v385
    %387 = vmatprep.subr.mxu0 0.0
    %v388 = vand.u32 %v63, 4294901760
    %v389 = vsub.f32 %v63, %v388
    %390 = vmatpush1.msra.mxu0 %v389
    %391 = vmatprep.subr.mxu0 0.0
    %v392 = vand.u32 %v64, 4294901760
    %v393 = vsub.f32 %v64, %v392
    %394 = vmatpush1.msra.mxu0 %v393
    %395 = vmatprep.subr.mxu0 0.0
    %396 = vmatpush1.msra.mxu0 0.0
    %397 = vmatprep.subr.mxu0 0.0
    %398 = vmatpush1.msra.mxu0 0.0
    %399 = vmatprep.subr.mxu0 0.0
    %400 = vmatpush1.msra.mxu0 0.0
    %401 = vmatprep.subr.mxu0 0.0
    %402 = vmatpush1.msra.mxu0 0.0
    %403 = vmatprep.subr.mxu0 0.0
    %404 = vmatpush1.msra.mxu0 0.0
    %405 = vmatprep.subr.mxu0 0.0
    %406 = vmatpush1.msra.mxu0 0.0
    %407 = vmatprep.subr.mxu0 0.0
    %408 = vmatpush1.msra.mxu0 0.0
    %409 = vmatprep.subr.mxu0 0.0
    %410 = vmatpush1.msra.mxu0 0.0
    %411 = vmatprep.subr.mxu0 0.0
    %412 = vmatpush1.msra.mxu0 0.0
    %413 = vmatprep.subr.mxu0 0.0
    %414 = vmatpush1.msra.mxu0 0.0
    %415 = vmatprep.subr.mxu0 0.0
    %416 = vmatpush1.msra.mxu0 0.0
    %417 = vmatprep.subr.mxu0 0.0
    %418 = vmatpush1.msra.mxu0 0.0
    %419 = vmatprep.subr.mxu0 0.0
    %420 = vmatpush1.msra.mxu0 0.0
    %421 = vmatprep.subr.mxu0 0.0
    %422 = vmatpush1.msra.mxu0 0.0
    %423 = vmatprep.subr.mxu0 0.0
    %424 = vmatpush1.msra.mxu0 0.0
    %425 = vmatprep.subr.mxu0 0.0
    %426 = vmatpush1.msra.mxu0 0.0
    %427 = vmatprep.mubr.f32.mxu0 0.0
    %v428 = vand.u32 %v81, 4294901760
    %v429 = vsub.f32 %v81, %v428
    %430 = vmatmul.mubr.f32.gmra.mrb[0].mxu0 %v429
    %v431 = vpop.f32.mrb[0].mxu0
    %v432 = vadd.f32 %v328, %v431
    %v433 = vpop.f32.mrb[0].mxu0
    %434 = vdwg.mxu0
    %435 = vmatprep.subr.mxu0 0.0
    %v436 = vand.u32 %v49, 4294901760
    %437 = vmatpush1.msra.mxu0 %v436
    %438 = vmatprep.subr.mxu0 0.0
    %v439 = vand.u32 %v50, 4294901760
    %440 = vmatpush1.msra.mxu0 %v439
    %441 = vmatprep.subr.mxu0 0.0
    %v442 = vand.u32 %v51, 4294901760
    %443 = vmatpush1.msra.mxu0 %v442
    %444 = vmatprep.subr.mxu0 0.0
    %v445 = vand.u32 %v52, 4294901760
    %446 = vmatpush1.msra.mxu0 %v445
    %447 = vmatprep.subr.mxu0 0.0
    %v448 = vand.u32 %v53, 4294901760
    %449 = vmatpush1.msra.mxu0 %v448
    %450 = vmatprep.subr.mxu0 0.0
    %v451 = vand.u32 %v54, 4294901760
    %452 = vmatpush1.msra.mxu0 %v451
    %453 = vmatprep.subr.mxu0 0.0
    %v454 = vand.u32 %v55, 4294901760
    %455 = vmatpush1.msra.mxu0 %v454
    %456 = vmatprep.subr.mxu0 0.0
    %v457 = vand.u32 %v56, 4294901760
    %458 = vmatpush1.msra.mxu0 %v457
    %459 = vmatprep.subr.mxu0 0.0
    %v460 = vand.u32 %v57, 4294901760
    %461 = vmatpush1.msra.mxu0 %v460
    %462 = vmatprep.subr.mxu0 0.0
    %v463 = vand.u32 %v58, 4294901760
    %464 = vmatpush1.msra.mxu0 %v463
    %465 = vmatprep.subr.mxu0 0.0
    %v466 = vand.u32 %v59, 4294901760
    %467 = vmatpush1.msra.mxu0 %v466
    %468 = vmatprep.subr.mxu0 0.0
    %v469 = vand.u32 %v60, 4294901760
    %470 = vmatpush1.msra.mxu0 %v469
    %471 = vmatprep.subr.mxu0 0.0
    %v472 = vand.u32 %v61, 4294901760
    %473 = vmatpush1.msra.mxu0 %v472
    %474 = vmatprep.subr.mxu0 0.0
    %v475 = vand.u32 %v62, 4294901760
    %476 = vmatpush1.msra.mxu0 %v475
    %477 = vmatprep.subr.mxu0 0.0
    %v478 = vand.u32 %v63, 4294901760
    %479 = vmatpush1.msra.mxu0 %v478
    %480 = vmatprep.subr.mxu0 0.0
    %v481 = vand.u32 %v64, 4294901760
    %482 = vmatpush1.msra.mxu0 %v481
    %483 = vmatprep.subr.mxu0 0.0
    %484 = vmatpush1.msra.mxu0 0.0
    %485 = vmatprep.subr.mxu0 0.0
    %486 = vmatpush1.msra.mxu0 0.0
    %487 = vmatprep.subr.mxu0 0.0
    %488 = vmatpush1.msra.mxu0 0.0
    %489 = vmatprep.subr.mxu0 0.0
    %490 = vmatpush1.msra.mxu0 0.0
    %491 = vmatprep.subr.mxu0 0.0
    %492 = vmatpush1.msra.mxu0 0.0
    %493 = vmatprep.subr.mxu0 0.0
    %494 = vmatpush1.msra.mxu0 0.0
    %495 = vmatprep.subr.mxu0 0.0
    %496 = vmatpush1.msra.mxu0 0.0
    %497 = vmatprep.subr.mxu0 0.0
    %498 = vmatpush1.msra.mxu0 0.0
    %499 = vmatprep.subr.mxu0 0.0
    %500 = vmatpush1.msra.mxu0 0.0
    %501 = vmatprep.subr.mxu0 0.0
    %502 = vmatpush1.msra.mxu0 0.0
    %503 = vmatprep.subr.mxu0 0.0
    %504 = vmatpush1.msra.mxu0 0.0
    %505 = vmatprep.subr.mxu0 0.0
    %506 = vmatpush1.msra.mxu0 0.0
    %507 = vmatprep.subr.mxu0 0.0
    %508 = vmatpush1.msra.mxu0 0.0
    %509 = vmatprep.subr.mxu0 0.0
    %510 = vmatpush1.msra.mxu0 0.0
    %511 = vmatprep.subr.mxu0 0.0
    %512 = vmatpush1.msra.mxu0 0.0
    %513 = vmatprep.subr.mxu0 0.0
    %514 = vmatpush1.msra.mxu0 0.0
    %515 = vmatprep.mubr.f32.mxu0 0.0
    %v516 = vand.u32 %v81, 4294901760
    %v517 = vsub.f32 %v81, %v516
    %v518 = vand.u32 %v517, 4294901760
    %519 = vmatmul.mubr.f32.gmra.mrb[0].mxu0 %v518
    %v520 = vpop.f32.mrb[0].mxu0
    %v521 = vadd.f32 %v432, %v520
    %v522 = vpop.f32.mrb[0].mxu0
    %523 = vdwg.mxu0
    %524 = vmatprep.subr.mxu0 0.0
    %v525 = vand.u32 %v49, 4294901760
    %v526 = vsub.f32 %v49, %v525
    %v527 = vand.u32 %v526, 4294901760
    %528 = vmatpush1.msra.mxu0 %v527
    %529 = vmatprep.subr.mxu0 0.0
    %v530 = vand.u32 %v50, 4294901760
    %v531 = vsub.f32 %v50, %v530
    %v532 = vand.u32 %v531, 4294901760
    %533 = vmatpush1.msra.mxu0 %v532
    %534 = vmatprep.subr.mxu0 0.0
    %v535 = vand.u32 %v51, 4294901760
    %v536 = vsub.f32 %v51, %v535
    %v537 = vand.u32 %v536, 4294901760
    %538 = vmatpush1.msra.mxu0 %v537
    %539 = vmatprep.subr.mxu0 0.0
    %v540 = vand.u32 %v52, 4294901760
    %v541 = vsub.f32 %v52, %v540
    %v542 = vand.u32 %v541, 4294901760
    %543 = vmatpush1.msra.mxu0 %v542
    %544 = vmatprep.subr.mxu0 0.0
    %v545 = vand.u32 %v53, 4294901760
    %v546 = vsub.f32 %v53, %v545
    %v547 = vand.u32 %v546, 4294901760
    %548 = vmatpush1.msra.mxu0 %v547
    %549 = vmatprep.subr.mxu0 0.0
    %v550 = vand.u32 %v54, 4294901760
    %v551 = vsub.f32 %v54, %v550
    %v552 = vand.u32 %v551, 4294901760
    %553 = vmatpush1.msra.mxu0 %v552
    %554 = vmatprep.subr.mxu0 0.0
    %v555 = vand.u32 %v55, 4294901760
    %v556 = vsub.f32 %v55, %v555
    %v557 = vand.u32 %v556, 4294901760
    %558 = vmatpush1.msra.mxu0 %v557
    %559 = vmatprep.subr.mxu0 0.0
    %v560 = vand.u32 %v56, 4294901760
    %v561 = vsub.f32 %v56, %v560
    %v562 = vand.u32 %v561, 4294901760
    %563 = vmatpush1.msra.mxu0 %v562
    %564 = vmatprep.subr.mxu0 0.0
    %v565 = vand.u32 %v57, 4294901760
    %v566 = vsub.f32 %v57, %v565
    %v567 = vand.u32 %v566, 4294901760
    %568 = vmatpush1.msra.mxu0 %v567
    %569 = vmatprep.subr.mxu0 0.0
    %v570 = vand.u32 %v58, 4294901760
    %v571 = vsub.f32 %v58, %v570
    %v572 = vand.u32 %v571, 4294901760
    %573 = vmatpush1.msra.mxu0 %v572
    %574 = vmatprep.subr.mxu0 0.0
    %v575 = vand.u32 %v59, 4294901760
    %v576 = vsub.f32 %v59, %v575
    %v577 = vand.u32 %v576, 4294901760
    %578 = vmatpush1.msra.mxu0 %v577
    %579 = vmatprep.subr.mxu0 0.0
    %v580 = vand.u32 %v60, 4294901760
    %v581 = vsub.f32 %v60, %v580
    %v582 = vand.u32 %v581, 4294901760
    %583 = vmatpush1.msra.mxu0 %v582
    %584 = vmatprep.subr.mxu0 0.0
    %v585 = vand.u32 %v61, 4294901760
    %v586 = vsub.f32 %v61, %v585
    %v587 = vand.u32 %v586, 4294901760
    %588 = vmatpush1.msra.mxu0 %v587
    %589 = vmatprep.subr.mxu0 0.0
    %v590 = vand.u32 %v62, 4294901760
    %v591 = vsub.f32 %v62, %v590
    %v592 = vand.u32 %v591, 4294901760
    %593 = vmatpush1.msra.mxu0 %v592
    %594 = vmatprep.subr.mxu0 0.0
    %v595 = vand.u32 %v63, 4294901760
    %v596 = vsub.f32 %v63, %v595
    %v597 = vand.u32 %v596, 4294901760
    %598 = vmatpush1.msra.mxu0 %v597
    %599 = vmatprep.subr.mxu0 0.0
    %v600 = vand.u32 %v64, 4294901760
    %v601 = vsub.f32 %v64, %v600
    %v602 = vand.u32 %v601, 4294901760
    %603 = vmatpush1.msra.mxu0 %v602
    %604 = vmatprep.subr.mxu0 0.0
    %605 = vmatpush1.msra.mxu0 0.0
    %606 = vmatprep.subr.mxu0 0.0
    %607 = vmatpush1.msra.mxu0 0.0
    %608 = vmatprep.subr.mxu0 0.0
    %609 = vmatpush1.msra.mxu0 0.0
    %610 = vmatprep.subr.mxu0 0.0
    %611 = vmatpush1.msra.mxu0 0.0
    %612 = vmatprep.subr.mxu0 0.0
    %613 = vmatpush1.msra.mxu0 0.0
    %614 = vmatprep.subr.mxu0 0.0
    %615 = vmatpush1.msra.mxu0 0.0
    %616 = vmatprep.subr.mxu0 0.0
    %617 = vmatpush1.msra.mxu0 0.0
    %618 = vmatprep.subr.mxu0 0.0
    %619 = vmatpush1.msra.mxu0 0.0
    %620 = vmatprep.subr.mxu0 0.0
    %621 = vmatpush1.msra.mxu0 0.0
    %622 = vmatprep.subr.mxu0 0.0
    %623 = vmatpush1.msra.mxu0 0.0
    %624 = vmatprep.subr.mxu0 0.0
    %625 = vmatpush1.msra.mxu0 0.0
    %626 = vmatprep.subr.mxu0 0.0
    %627 = vmatpush1.msra.mxu0 0.0
    %628 = vmatprep.subr.mxu0 0.0
    %629 = vmatpush1.msra.mxu0 0.0
    %630 = vmatprep.subr.mxu0 0.0
    %631 = vmatpush1.msra.mxu0 0.0
    %632 = vmatprep.subr.mxu0 0.0
    %633 = vmatpush1.msra.mxu0 0.0
    %634 = vmatprep.subr.mxu0 0.0
    %635 = vmatpush1.msra.mxu0 0.0
    %636 = vmatprep.mubr.f32.mxu0 0.0
    %v637 = vand.u32 %v81, 4294901760
    %638 = vmatmul.mubr.f32.gmra.mrb[0].mxu0 %v637
    %v639 = vpop.f32.mrb[0].mxu0
    %v640 = vadd.f32 %v521, %v639
    %v641 = vpop.f32.mrb[0].mxu0
    %642 = vdwg.mxu0
    %643 = vmatprep.subr.mxu0 0.0
    %v644 = vand.u32 %v49, 4294901760
    %645 = vmatpush1.msra.mxu0 %v644
    %646 = vmatprep.subr.mxu0 0.0
    %v647 = vand.u32 %v50, 4294901760
    %648 = vmatpush1.msra.mxu0 %v647
    %649 = vmatprep.subr.mxu0 0.0
    %v650 = vand.u32 %v51, 4294901760
    %651 = vmatpush1.msra.mxu0 %v650
    %652 = vmatprep.subr.mxu0 0.0
    %v653 = vand.u32 %v52, 4294901760
    %654 = vmatpush1.msra.mxu0 %v653
    %655 = vmatprep.subr.mxu0 0.0
    %v656 = vand.u32 %v53, 4294901760
    %657 = vmatpush1.msra.mxu0 %v656
    %658 = vmatprep.subr.mxu0 0.0
    %v659 = vand.u32 %v54, 4294901760
    %660 = vmatpush1.msra.mxu0 %v659
    %661 = vmatprep.subr.mxu0 0.0
    %v662 = vand.u32 %v55, 4294901760
    %663 = vmatpush1.msra.mxu0 %v662
    %664 = vmatprep.subr.mxu0 0.0
    %v665 = vand.u32 %v56, 4294901760
    %666 = vmatpush1.msra.mxu0 %v665
    %667 = vmatprep.subr.mxu0 0.0
    %v668 = vand.u32 %v57, 4294901760
    %669 = vmatpush1.msra.mxu0 %v668
    %670 = vmatprep.subr.mxu0 0.0
    %v671 = vand.u32 %v58, 4294901760
    %672 = vmatpush1.msra.mxu0 %v671
    %673 = vmatprep.subr.mxu0 0.0
    %v674 = vand.u32 %v59, 4294901760
    %675 = vmatpush1.msra.mxu0 %v674
    %676 = vmatprep.subr.mxu0 0.0
    %v677 = vand.u32 %v60, 4294901760
    %678 = vmatpush1.msra.mxu0 %v677
    %679 = vmatprep.subr.mxu0 0.0
    %v680 = vand.u32 %v61, 4294901760
    %681 = vmatpush1.msra.mxu0 %v680
    %682 = vmatprep.subr.mxu0 0.0
    %v683 = vand.u32 %v62, 4294901760
    %684 = vmatpush1.msra.mxu0 %v683
    %685 = vmatprep.subr.mxu0 0.0
    %v686 = vand.u32 %v63, 4294901760
    %687 = vmatpush1.msra.mxu0 %v686
    %688 = vmatprep.subr.mxu0 0.0
    %v689 = vand.u32 %v64, 4294901760
    %690 = vmatpush1.msra.mxu0 %v689
    %691 = vmatprep.subr.mxu0 0.0
    %692 = vmatpush1.msra.mxu0 0.0
    %693 = vmatprep.subr.mxu0 0.0
    %694 = vmatpush1.msra.mxu0 0.0
    %695 = vmatprep.subr.mxu0 0.0
    %696 = vmatpush1.msra.mxu0 0.0
    %697 = vmatprep.subr.mxu0 0.0
    %698 = vmatpush1.msra.mxu0 0.0
    %699 = vmatprep.subr.mxu0 0.0
    %700 = vmatpush1.msra.mxu0 0.0
    %701 = vmatprep.subr.mxu0 0.0
    %702 = vmatpush1.msra.mxu0 0.0
    %703 = vmatprep.subr.mxu0 0.0
    %704 = vmatpush1.msra.mxu0 0.0
    %705 = vmatprep.subr.mxu0 0.0
    %706 = vmatpush1.msra.mxu0 0.0
    %707 = vmatprep.subr.mxu0 0.0
    %708 = vmatpush1.msra.mxu0 0.0
    %709 = vmatprep.subr.mxu0 0.0
    %710 = vmatpush1.msra.mxu0 0.0
    %711 = vmatprep.subr.mxu0 0.0
    %712 = vmatpush1.msra.mxu0 0.0
    %713 = vmatprep.subr.mxu0 0.0
    %714 = vmatpush1.msra.mxu0 0.0
    %715 = vmatprep.subr.mxu0 0.0
    %716 = vmatpush1.msra.mxu0 0.0
    %717 = vmatprep.subr.mxu0 0.0
    %718 = vmatpush1.msra.mxu0 0.0
    %719 = vmatprep.subr.mxu0 0.0
    %720 = vmatpush1.msra.mxu0 0.0
    %721 = vmatprep.subr.mxu0 0.0
    %722 = vmatpush1.msra.mxu0 0.0
    %723 = vmatprep.mubr.f32.mxu0 0.0
    %v724 = vand.u32 %v81, 4294901760
    %725 = vmatmul.mubr.f32.gmra.mrb[0].mxu0 %v724
    %v726 = vpop.f32.mrb[0].mxu0
    %v727 = vadd.f32 %v640, %v726
    %v728 = vpop.f32.mrb[0].mxu0
    %729 = vdwg.mxu0
    %v730 = vmax.f32 %v727, 0.0
    %v731 = vld [vmem:[%s4] sm:$0x1]
    %v733 = vlaneseq
    %v734 = vshrl.u32 %v733, 7
    %v735 = vsub.s32 0, %v734
    %v736 = vrot.slane %v731, %v735
    %738 = vmatprep.subr.mxu0 0.0
    %v739 = vand.u32 %v65, 4294901760
    %740 = vmatpush1.msra.mxu0 %v739
    %741 = vmatprep.subr.mxu0 0.0
    %v742 = vand.u32 %v66, 4294901760
    %743 = vmatpush1.msra.mxu0 %v742
    %744 = vmatprep.subr.mxu0 0.0
    %v745 = vand.u32 %v67, 4294901760
    %746 = vmatpush1.msra.mxu0 %v745
    %747 = vmatprep.subr.mxu0 0.0
    %v748 = vand.u32 %v68, 4294901760
    %749 = vmatpush1.msra.mxu0 %v748
    %750 = vmatprep.subr.mxu0 0.0
    %v751 = vand.u32 %v69, 4294901760
    %752 = vmatpush1.msra.mxu0 %v751
    %753 = vmatprep.subr.mxu0 0.0
    %v754 = vand.u32 %v70, 4294901760
    %755 = vmatpush1.msra.mxu0 %v754
    %756 = vmatprep.subr.mxu0 0.0
    %v757 = vand.u32 %v71, 4294901760
    %758 = vmatpush1.msra.mxu0 %v757
    %759 = vmatprep.subr.mxu0 0.0
    %v760 = vand.u32 %v72, 4294901760
    %761 = vmatpush1.msra.mxu0 %v760
    %762 = vmatprep.subr.mxu0 0.0
    %v763 = vand.u32 %v73, 4294901760
    %764 = vmatpush1.msra.mxu0 %v763
    %765 = vmatprep.subr.mxu0 0.0
    %v766 = vand.u32 %v74, 4294901760
    %767 = vmatpush1.msra.mxu0 %v766
    %768 = vmatprep.subr.mxu0 0.0
    %v769 = vand.u32 %v75, 4294901760
    %770 = vmatpush1.msra.mxu0 %v769
    %771 = vmatprep.subr.mxu0 0.0
    %v772 = vand.u32 %v76, 4294901760
    %773 = vmatpush1.msra.mxu0 %v772
    %774 = vmatprep.subr.mxu0 0.0
    %v775 = vand.u32 %v77, 4294901760
    %776 = vmatpush1.msra.mxu0 %v775
    %777 = vmatprep.subr.mxu0 0.0
    %v778 = vand.u32 %v78, 4294901760
    %779 = vmatpush1.msra.mxu0 %v778
    %780 = vmatprep.subr.mxu0 0.0
    %v781 = vand.u32 %v79, 4294901760
    %782 = vmatpush1.msra.mxu0 %v781
    %783 = vmatprep.subr.mxu0 0.0
    %v784 = vand.u32 %v80, 4294901760
    %785 = vmatpush1.msra.mxu0 %v784
    %786 = vmatprep.subr.mxu0 0.0
    %787 = vmatpush1.msra.mxu0 0.0
    %788 = vmatprep.subr.mxu0 0.0
    %789 = vmatpush1.msra.mxu0 0.0
    %790 = vmatprep.subr.mxu0 0.0
    %791 = vmatpush1.msra.mxu0 0.0
    %792 = vmatprep.subr.mxu0 0.0
    %793 = vmatpush1.msra.mxu0 0.0
    %794 = vmatprep.subr.mxu0 0.0
    %795 = vmatpush1.msra.mxu0 0.0
    %796 = vmatprep.subr.mxu0 0.0
    %797 = vmatpush1.msra.mxu0 0.0
    %798 = vmatprep.subr.mxu0 0.0
    %799 = vmatpush1.msra.mxu0 0.0
    %800 = vmatprep.subr.mxu0 0.0
    %801 = vmatpush1.msra.mxu0 0.0
    %802 = vmatprep.subr.mxu0 0.0
    %803 = vmatpush1.msra.mxu0 0.0
    %804 = vmatprep.subr.mxu0 0.0
    %805 = vmatpush1.msra.mxu0 0.0
    %806 = vmatprep.subr.mxu0 0.0
    %807 = vmatpush1.msra.mxu0 0.0
    %808 = vmatprep.subr.mxu0 0.0
    %809 = vmatpush1.msra.mxu0 0.0
    %810 = vmatprep.subr.mxu0 0.0
    %811 = vmatpush1.msra.mxu0 0.0
    %812 = vmatprep.subr.mxu0 0.0
    %813 = vmatpush1.msra.mxu0 0.0
    %814 = vmatprep.subr.mxu0 0.0
    %815 = vmatpush1.msra.mxu0 0.0
    %816 = vmatprep.subr.mxu0 0.0
    %817 = vmatpush1.msra.mxu0 0.0
    %818 = vmatprep.mubr.f32.mxu0 0.0
    %v819 = vand.u32 %v730, 4294901760
    %v820 = vsub.f32 %v730, %v819
    %v821 = vand.u32 %v820, 4294901760
    %v822 = vsub.f32 %v820, %v821
    %v823 = vand.u32 %v822, 4294901760
    %824 = vmatmul.mubr.f32.gmra.mrb[0].mxu0 %v823
    %v825 = vpop.f32.mrb[0].mxu0
    %v826 = vadd.f32 %v736, %v825
    %v827 = vpop.f32.mrb[0].mxu0
    %828 = vdwg.mxu0
    %829 = vmatprep.subr.mxu0 0.0
    %v830 = vand.u32 %v65, 4294901760
    %v831 = vsub.f32 %v65, %v830
    %v832 = vand.u32 %v831, 4294901760
    %v833 = vsub.f32 %v831, %v832
    %v834 = vand.u32 %v833, 4294901760
    %835 = vmatpush1.msra.mxu0 %v834
    %836 = vmatprep.subr.mxu0 0.0
    %v837 = vand.u32 %v66, 4294901760
    %v838 = vsub.f32 %v66, %v837
    %v839 = vand.u32 %v838, 4294901760
    %v840 = vsub.f32 %v838, %v839
    %v841 = vand.u32 %v840, 4294901760
    %842 = vmatpush1.msra.mxu0 %v841
    %843 = vmatprep.subr.mxu0 0.0
    %v844 = vand.u32 %v67, 4294901760
    %v845 = vsub.f32 %v67, %v844
    %v846 = vand.u32 %v845, 4294901760
    %v847 = vsub.f32 %v845, %v846
    %v848 = vand.u32 %v847, 4294901760
    %849 = vmatpush1.msra.mxu0 %v848
    %850 = vmatprep.subr.mxu0 0.0
    %v851 = vand.u32 %v68, 4294901760
    %v852 = vsub.f32 %v68, %v851
    %v853 = vand.u32 %v852, 4294901760
    %v854 = vsub.f32 %v852, %v853
    %v855 = vand.u32 %v854, 4294901760
    %856 = vmatpush1.msra.mxu0 %v855
    %857 = vmatprep.subr.mxu0 0.0
    %v858 = vand.u32 %v69, 4294901760
    %v859 = vsub.f32 %v69, %v858
    %v860 = vand.u32 %v859, 4294901760
    %v861 = vsub.f32 %v859, %v860
    %v862 = vand.u32 %v861, 4294901760
    %863 = vmatpush1.msra.mxu0 %v862
    %864 = vmatprep.subr.mxu0 0.0
    %v865 = vand.u32 %v70, 4294901760
    %v866 = vsub.f32 %v70, %v865
    %v867 = vand.u32 %v866, 4294901760
    %v868 = vsub.f32 %v866, %v867
    %v869 = vand.u32 %v868, 4294901760
    %870 = vmatpush1.msra.mxu0 %v869
    %871 = vmatprep.subr.mxu0 0.0
    %v872 = vand.u32 %v71, 4294901760
    %v873 = vsub.f32 %v71, %v872
    %v874 = vand.u32 %v873, 4294901760
    %v875 = vsub.f32 %v873, %v874
    %v876 = vand.u32 %v875, 4294901760
    %877 = vmatpush1.msra.mxu0 %v876
    %878 = vmatprep.subr.mxu0 0.0
    %v879 = vand.u32 %v72, 4294901760
    %v880 = vsub.f32 %v72, %v879
    %v881 = vand.u32 %v880, 4294901760
    %v882 = vsub.f32 %v880, %v881
    %v883 = vand.u32 %v882, 4294901760
    %884 = vmatpush1.msra.mxu0 %v883
    %885 = vmatprep.subr.mxu0 0.0
    %v886 = vand.u32 %v73, 4294901760
    %v887 = vsub.f32 %v73, %v886
    %v888 = vand.u32 %v887, 4294901760
    %v889 = vsub.f32 %v887, %v888
    %v890 = vand.u32 %v889, 4294901760
    %891 = vmatpush1.msra.mxu0 %v890
    %892 = vmatprep.subr.mxu0 0.0
    %v893 = vand.u32 %v74, 4294901760
    %v894 = vsub.f32 %v74, %v893
    %v895 = vand.u32 %v894, 4294901760
    %v896 = vsub.f32 %v894, %v895
    %v897 = vand.u32 %v896, 4294901760
    %898 = vmatpush1.msra.mxu0 %v897
    %899 = vmatprep.subr.mxu0 0.0
    %v900 = vand.u32 %v75, 4294901760
    %v901 = vsub.f32 %v75, %v900
    %v902 = vand.u32 %v901, 4294901760
    %v903 = vsub.f32 %v901, %v902
    %v904 = vand.u32 %v903, 4294901760
    %905 = vmatpush1.msra.mxu0 %v904
    %906 = vmatprep.subr.mxu0 0.0
    %v907 = vand.u32 %v76, 4294901760
    %v908 = vsub.f32 %v76, %v907
    %v909 = vand.u32 %v908, 4294901760
    %v910 = vsub.f32 %v908, %v909
    %v911 = vand.u32 %v910, 4294901760
    %912 = vmatpush1.msra.mxu0 %v911
    %913 = vmatprep.subr.mxu0 0.0
    %v914 = vand.u32 %v77, 4294901760
    %v915 = vsub.f32 %v77, %v914
    %v916 = vand.u32 %v915, 4294901760
    %v917 = vsub.f32 %v915, %v916
    %v918 = vand.u32 %v917, 4294901760
    %919 = vmatpush1.msra.mxu0 %v918
    %920 = vmatprep.subr.mxu0 0.0
    %v921 = vand.u32 %v78, 4294901760
    %v922 = vsub.f32 %v78, %v921
    %v923 = vand.u32 %v922, 4294901760
    %v924 = vsub.f32 %v922, %v923
    %v925 = vand.u32 %v924, 4294901760
    %926 = vmatpush1.msra.mxu0 %v925
    %927 = vmatprep.subr.mxu0 0.0
    %v928 = vand.u32 %v79, 4294901760
    %v929 = vsub.f32 %v79, %v928
    %v930 = vand.u32 %v929, 4294901760
    %v931 = vsub.f32 %v929, %v930
    %v932 = vand.u32 %v931, 4294901760
    %933 = vmatpush1.msra.mxu0 %v932
    %934 = vmatprep.subr.mxu0 0.0
    %v935 = vand.u32 %v80, 4294901760
    %v936 = vsub.f32 %v80, %v935
    %v937 = vand.u32 %v936, 4294901760
    %v938 = vsub.f32 %v936, %v937
    %v939 = vand.u32 %v938, 4294901760
    %940 = vmatpush1.msra.mxu0 %v939
    %941 = vmatprep.subr.mxu0 0.0
    %942 = vmatpush1.msra.mxu0 0.0
    %943 = vmatprep.subr.mxu0 0.0
    %944 = vmatpush1.msra.mxu0 0.0
    %945 = vmatprep.subr.mxu0 0.0
    %946 = vmatpush1.msra.mxu0 0.0
    %947 = vmatprep.subr.mxu0 0.0
    %948 = vmatpush1.msra.mxu0 0.0
    %949 = vmatprep.subr.mxu0 0.0
    %950 = vmatpush1.msra.mxu0 0.0
    %951 = vmatprep.subr.mxu0 0.0
    %952 = vmatpush1.msra.mxu0 0.0
    %953 = vmatprep.subr.mxu0 0.0
    %954 = vmatpush1.msra.mxu0 0.0
    %955 = vmatprep.subr.mxu0 0.0
    %956 = vmatpush1.msra.mxu0 0.0
    %957 = vmatprep.subr.mxu0 0.0
    %958 = vmatpush1.msra.mxu0 0.0
    %959 = vmatprep.subr.mxu0 0.0
    %960 = vmatpush1.msra.mxu0 0.0
    %961 = vmatprep.subr.mxu0 0.0
    %962 = vmatpush1.msra.mxu0 0.0
    %963 = vmatprep.subr.mxu0 0.0
    %964 = vmatpush1.msra.mxu0 0.0
    %965 = vmatprep.subr.mxu0 0.0
    %966 = vmatpush1.msra.mxu0 0.0
    %967 = vmatprep.subr.mxu0 0.0
    %968 = vmatpush1.msra.mxu0 0.0
    %969 = vmatprep.subr.mxu0 0.0
    %970 = vmatpush1.msra.mxu0 0.0
    %971 = vmatprep.subr.mxu0 0.0
    %972 = vmatpush1.msra.mxu0 0.0
    %973 = vmatprep.mubr.f32.mxu0 0.0
    %v974 = vand.u32 %v730, 4294901760
    %975 = vmatmul.mubr.f32.gmra.mrb[0].mxu0 %v974
    %v976 = vpop.f32.mrb[0].mxu0
    %v977 = vadd.f32 %v826, %v976
    %v978 = vpop.f32.mrb[0].mxu0
    %979 = vdwg.mxu0
    %980 = vmatprep.subr.mxu0 0.0
    %v981 = vand.u32 %v65, 4294901760
    %v982 = vsub.f32 %v65, %v981
    %983 = vmatpush1.msra.mxu0 %v982
    %984 = vmatprep.subr.mxu0 0.0
    %v985 = vand.u32 %v66, 4294901760
    %v986 = vsub.f32 %v66, %v985
    %987 = vmatpush1.msra.mxu0 %v986
    %988 = vmatprep.subr.mxu0 0.0
    %v989 = vand.u32 %v67, 4294901760
    %v990 = vsub.f32 %v67, %v989
    %991 = vmatpush1.msra.mxu0 %v990
    %992 = vmatprep.subr.mxu0 0.0
    %v993 = vand.u32 %v68, 4294901760
    %v994 = vsub.f32 %v68, %v993
    %995 = vmatpush1.msra.mxu0 %v994
    %996 = vmatprep.subr.mxu0 0.0
    %v997 = vand.u32 %v69, 4294901760
    %v998 = vsub.f32 %v69, %v997
    %999 = vmatpush1.msra.mxu0 %v998
    %1000 = vmatprep.subr.mxu0 0.0
    %v1001 = vand.u32 %v70, 4294901760
    %v1002 = vsub.f32 %v70, %v1001
    %1003 = vmatpush1.msra.mxu0 %v1002
    %1004 = vmatprep.subr.mxu0 0.0
    %v1005 = vand.u32 %v71, 4294901760
    %v1006 = vsub.f32 %v71, %v1005
    %1007 = vmatpush1.msra.mxu0 %v1006
    %1008 = vmatprep.subr.mxu0 0.0
    %v1009 = vand.u32 %v72, 4294901760
    %v1010 = vsub.f32 %v72, %v1009
    %1011 = vmatpush1.msra.mxu0 %v1010
    %1012 = vmatprep.subr.mxu0 0.0
    %v1013 = vand.u32 %v73, 4294901760
    %v1014 = vsub.f32 %v73, %v1013
    %1015 = vmatpush1.msra.mxu0 %v1014
    %1016 = vmatprep.subr.mxu0 0.0
    %v1017 = vand.u32 %v74, 4294901760
    %v1018 = vsub.f32 %v74, %v1017
    %1019 = vmatpush1.msra.mxu0 %v1018
    %1020 = vmatprep.subr.mxu0 0.0
    %v1021 = vand.u32 %v75, 4294901760
    %v1022 = vsub.f32 %v75, %v1021
    %1023 = vmatpush1.msra.mxu0 %v1022
    %1024 = vmatprep.subr.mxu0 0.0
    %v1025 = vand.u32 %v76, 4294901760
    %v1026 = vsub.f32 %v76, %v1025
    %1027 = vmatpush1.msra.mxu0 %v1026
    %1028 = vmatprep.subr.mxu0 0.0
    %v1029 = vand.u32 %v77, 4294901760
    %v1030 = vsub.f32 %v77, %v1029
    %1031 = vmatpush1.msra.mxu0 %v1030
    %1032 = vmatprep.subr.mxu0 0.0
    %v1033 = vand.u32 %v78, 4294901760
    %v1034 = vsub.f32 %v78, %v1033
    %1035 = vmatpush1.msra.mxu0 %v1034
    %1036 = vmatprep.subr.mxu0 0.0
    %v1037 = vand.u32 %v79, 4294901760
    %v1038 = vsub.f32 %v79, %v1037
    %1039 = vmatpush1.msra.mxu0 %v1038
    %1040 = vmatprep.subr.mxu0 0.0
    %v1041 = vand.u32 %v80, 4294901760
    %v1042 = vsub.f32 %v80, %v1041
    %1043 = vmatpush1.msra.mxu0 %v1042
    %1044 = vmatprep.subr.mxu0 0.0
    %1045 = vmatpush1.msra.mxu0 0.0
    %1046 = vmatprep.subr.mxu0 0.0
    %1047 = vmatpush1.msra.mxu0 0.0
    %1048 = vmatprep.subr.mxu0 0.0
    %1049 = vmatpush1.msra.mxu0 0.0
    %1050 = vmatprep.subr.mxu0 0.0
    %1051 = vmatpush1.msra.mxu0 0.0
    %1052 = vmatprep.subr.mxu0 0.0
    %1053 = vmatpush1.msra.mxu0 0.0
    %1054 = vmatprep.subr.mxu0 0.0
    %1055 = vmatpush1.msra.mxu0 0.0
    %1056 = vmatprep.subr.mxu0 0.0
    %1057 = vmatpush1.msra.mxu0 0.0
    %1058 = vmatprep.subr.mxu0 0.0
    %1059 = vmatpush1.msra.mxu0 0.0
    %1060 = vmatprep.subr.mxu0 0.0
    %1061 = vmatpush1.msra.mxu0 0.0
    %1062 = vmatprep.subr.mxu0 0.0
    %1063 = vmatpush1.msra.mxu0 0.0
    %1064 = vmatprep.subr.mxu0 0.0
    %1065 = vmatpush1.msra.mxu0 0.0
    %1066 = vmatprep.subr.mxu0 0.0
    %1067 = vmatpush1.msra.mxu0 0.0
    %1068 = vmatprep.subr.mxu0 0.0
    %1069 = vmatpush1.msra.mxu0 0.0
    %1070 = vmatprep.subr.mxu0 0.0
    %1071 = vmatpush1.msra.mxu0 0.0
    %1072 = vmatprep.subr.mxu0 0.0
    %1073 = vmatpush1.msra.mxu0 0.0
    %1074 = vmatprep.subr.mxu0 0.0
    %1075 = vmatpush1.msra.mxu0 0.0
    %1076 = vmatprep.mubr.f32.mxu0 0.0
    %v1077 = vand.u32 %v730, 4294901760
    %v1078 = vsub.f32 %v730, %v1077
    %1079 = vmatmul.mubr.f32.gmra.mrb[0].mxu0 %v1078
    %v1080 = vpop.f32.mrb[0].mxu0
    %v1081 = vadd.f32 %v977, %v1080
    %v1082 = vpop.f32.mrb[0].mxu0
    %1083 = vdwg.mxu0
    %1084 = vmatprep.subr.mxu0 0.0
    %v1085 = vand.u32 %v65, 4294901760
    %1086 = vmatpush1.msra.mxu0 %v1085
    %1087 = vmatprep.subr.mxu0 0.0
    %v1088 = vand.u32 %v66, 4294901760
    %1089 = vmatpush1.msra.mxu0 %v1088
    %1090 = vmatprep.subr.mxu0 0.0
    %v1091 = vand.u32 %v67, 4294901760
    %1092 = vmatpush1.msra.mxu0 %v1091
    %1093 = vmatprep.subr.mxu0 0.0
    %v1094 = vand.u32 %v68, 4294901760
    %1095 = vmatpush1.msra.mxu0 %v1094
    %1096 = vmatprep.subr.mxu0 0.0
    %v1097 = vand.u32 %v69, 4294901760
    %1098 = vmatpush1.msra.mxu0 %v1097
    %1099 = vmatprep.subr.mxu0 0.0
    %v1100 = vand.u32 %v70, 4294901760
    %1101 = vmatpush1.msra.mxu0 %v1100
    %1102 = vmatprep.subr.mxu0 0.0
    %v1103 = vand.u32 %v71, 4294901760
    %1104 = vmatpush1.msra.mxu0 %v1103
    %1105 = vmatprep.subr.mxu0 0.0
    %v1106 = vand.u32 %v72, 4294901760
    %1107 = vmatpush1.msra.mxu0 %v1106
    %1108 = vmatprep.subr.mxu0 0.0
    %v1109 = vand.u32 %v73, 4294901760
    %1110 = vmatpush1.msra.mxu0 %v1109
    %1111 = vmatprep.subr.mxu0 0.0
    %v1112 = vand.u32 %v74, 4294901760
    %1113 = vmatpush1.msra.mxu0 %v1112
    %1114 = vmatprep.subr.mxu0 0.0
    %v1115 = vand.u32 %v75, 4294901760
    %1116 = vmatpush1.msra.mxu0 %v1115
    %1117 = vmatprep.subr.mxu0 0.0
    %v1118 = vand.u32 %v76, 4294901760
    %1119 = vmatpush1.msra.mxu0 %v1118
    %1120 = vmatprep.subr.mxu0 0.0
    %v1121 = vand.u32 %v77, 4294901760
    %1122 = vmatpush1.msra.mxu0 %v1121
    %1123 = vmatprep.subr.mxu0 0.0
    %v1124 = vand.u32 %v78, 4294901760
    %1125 = vmatpush1.msra.mxu0 %v1124
    %1126 = vmatprep.subr.mxu0 0.0
    %v1127 = vand.u32 %v79, 4294901760
    %1128 = vmatpush1.msra.mxu0 %v1127
    %1129 = vmatprep.subr.mxu0 0.0
    %v1130 = vand.u32 %v80, 4294901760
    %1131 = vmatpush1.msra.mxu0 %v1130
    %1132 = vmatprep.subr.mxu0 0.0
    %1133 = vmatpush1.msra.mxu0 0.0
    %1134 = vmatprep.subr.mxu0 0.0
    %1135 = vmatpush1.msra.mxu0 0.0
    %1136 = vmatprep.subr.mxu0 0.0
    %1137 = vmatpush1.msra.mxu0 0.0
    %1138 = vmatprep.subr.mxu0 0.0
    %1139 = vmatpush1.msra.mxu0 0.0
    %1140 = vmatprep.subr.mxu0 0.0
    %1141 = vmatpush1.msra.mxu0 0.0
    %1142 = vmatprep.subr.mxu0 0.0
    %1143 = vmatpush1.msra.mxu0 0.0
    %1144 = vmatprep.subr.mxu0 0.0
    %1145 = vmatpush1.msra.mxu0 0.0
    %1146 = vmatprep.subr.mxu0 0.0
    %1147 = vmatpush1.msra.mxu0 0.0
    %1148 = vmatprep.subr.mxu0 0.0
    %1149 = vmatpush1.msra.mxu0 0.0
    %1150 = vmatprep.subr.mxu0 0.0
    %1151 = vmatpush1.msra.mxu0 0.0
    %1152 = vmatprep.subr.mxu0 0.0
    %1153 = vmatpush1.msra.mxu0 0.0
    %1154 = vmatprep.subr.mxu0 0.0
    %1155 = vmatpush1.msra.mxu0 0.0
    %1156 = vmatprep.subr.mxu0 0.0
    %1157 = vmatpush1.msra.mxu0 0.0
    %1158 = vmatprep.subr.mxu0 0.0
    %1159 = vmatpush1.msra.mxu0 0.0
    %1160 = vmatprep.subr.mxu0 0.0
    %1161 = vmatpush1.msra.mxu0 0.0
    %1162 = vmatprep.subr.mxu0 0.0
    %1163 = vmatpush1.msra.mxu0 0.0
    %1164 = vmatprep.mubr.f32.mxu0 0.0
    %v1165 = vand.u32 %v730, 4294901760
    %v1166 = vsub.f32 %v730, %v1165
    %v1167 = vand.u32 %v1166, 4294901760
    %1168 = vmatmul.mubr.f32.gmra.mrb[0].mxu0 %v1167
    %v1169 = vpop.f32.mrb[0].mxu0
    %v1170 = vadd.f32 %v1081, %v1169
    %v1171 = vpop.f32.mrb[0].mxu0
    %1172 = vdwg.mxu0
    %1173 = vmatprep.subr.mxu0 0.0
    %v1174 = vand.u32 %v65, 4294901760
    %v1175 = vsub.f32 %v65, %v1174
    %v1176 = vand.u32 %v1175, 4294901760
    %1177 = vmatpush1.msra.mxu0 %v1176
    %1178 = vmatprep.subr.mxu0 0.0
    %v1179 = vand.u32 %v66, 4294901760
    %v1180 = vsub.f32 %v66, %v1179
    %v1181 = vand.u32 %v1180, 4294901760
    %1182 = vmatpush1.msra.mxu0 %v1181
    %1183 = vmatprep.subr.mxu0 0.0
    %v1184 = vand.u32 %v67, 4294901760
    %v1185 = vsub.f32 %v67, %v1184
    %v1186 = vand.u32 %v1185, 4294901760
    %1187 = vmatpush1.msra.mxu0 %v1186
    %1188 = vmatprep.subr.mxu0 0.0
    %v1189 = vand.u32 %v68, 4294901760
    %v1190 = vsub.f32 %v68, %v1189
    %v1191 = vand.u32 %v1190, 4294901760
    %1192 = vmatpush1.msra.mxu0 %v1191
    %1193 = vmatprep.subr.mxu0 0.0
    %v1194 = vand.u32 %v69, 4294901760
    %v1195 = vsub.f32 %v69, %v1194
    %v1196 = vand.u32 %v1195, 4294901760
    %1197 = vmatpush1.msra.mxu0 %v1196
    %1198 = vmatprep.subr.mxu0 0.0
    %v1199 = vand.u32 %v70, 4294901760
    %v1200 = vsub.f32 %v70, %v1199
    %v1201 = vand.u32 %v1200, 4294901760
    %1202 = vmatpush1.msra.mxu0 %v1201
    %1203 = vmatprep.subr.mxu0 0.0
    %v1204 = vand.u32 %v71, 4294901760
    %v1205 = vsub.f32 %v71, %v1204
    %v1206 = vand.u32 %v1205, 4294901760
    %1207 = vmatpush1.msra.mxu0 %v1206
    %1208 = vmatprep.subr.mxu0 0.0
    %v1209 = vand.u32 %v72, 4294901760
    %v1210 = vsub.f32 %v72, %v1209
    %v1211 = vand.u32 %v1210, 4294901760
    %1212 = vmatpush1.msra.mxu0 %v1211
    %1213 = vmatprep.subr.mxu0 0.0
    %v1214 = vand.u32 %v73, 4294901760
    %v1215 = vsub.f32 %v73, %v1214
    %v1216 = vand.u32 %v1215, 4294901760
    %1217 = vmatpush1.msra.mxu0 %v1216
    %1218 = vmatprep.subr.mxu0 0.0
    %v1219 = vand.u32 %v74, 4294901760
    %v1220 = vsub.f32 %v74, %v1219
    %v1221 = vand.u32 %v1220, 4294901760
    %1222 = vmatpush1.msra.mxu0 %v1221
    %1223 = vmatprep.subr.mxu0 0.0
    %v1224 = vand.u32 %v75, 4294901760
    %v1225 = vsub.f32 %v75, %v1224
    %v1226 = vand.u32 %v1225, 4294901760
    %1227 = vmatpush1.msra.mxu0 %v1226
    %1228 = vmatprep.subr.mxu0 0.0
    %v1229 = vand.u32 %v76, 4294901760
    %v1230 = vsub.f32 %v76, %v1229
    %v1231 = vand.u32 %v1230, 4294901760
    %1232 = vmatpush1.msra.mxu0 %v1231
    %1233 = vmatprep.subr.mxu0 0.0
    %v1234 = vand.u32 %v77, 4294901760
    %v1235 = vsub.f32 %v77, %v1234
    %v1236 = vand.u32 %v1235, 4294901760
    %1237 = vmatpush1.msra.mxu0 %v1236
    %1238 = vmatprep.subr.mxu0 0.0
    %v1239 = vand.u32 %v78, 4294901760
    %v1240 = vsub.f32 %v78, %v1239
    %v1241 = vand.u32 %v1240, 4294901760
    %1242 = vmatpush1.msra.mxu0 %v1241
    %1243 = vmatprep.subr.mxu0 0.0
    %v1244 = vand.u32 %v79, 4294901760
    %v1245 = vsub.f32 %v79, %v1244
    %v1246 = vand.u32 %v1245, 4294901760
    %1247 = vmatpush1.msra.mxu0 %v1246
    %1248 = vmatprep.subr.mxu0 0.0
    %v1249 = vand.u32 %v80, 4294901760
    %v1250 = vsub.f32 %v80, %v1249
    %v1251 = vand.u32 %v1250, 4294901760
    %1252 = vmatpush1.msra.mxu0 %v1251
    %1253 = vmatprep.subr.mxu0 0.0
    %1254 = vmatpush1.msra.mxu0 0.0
    %1255 = vmatprep.subr.mxu0 0.0
    %1256 = vmatpush1.msra.mxu0 0.0
    %1257 = vmatprep.subr.mxu0 0.0
    %1258 = vmatpush1.msra.mxu0 0.0
    %1259 = vmatprep.subr.mxu0 0.0
    %1260 = vmatpush1.msra.mxu0 0.0
    %1261 = vmatprep.subr.mxu0 0.0
    %1262 = vmatpush1.msra.mxu0 0.0
    %1263 = vmatprep.subr.mxu0 0.0
    %1264 = vmatpush1.msra.mxu0 0.0
    %1265 = vmatprep.subr.mxu0 0.0
    %1266 = vmatpush1.msra.mxu0 0.0
    %1267 = vmatprep.subr.mxu0 0.0
    %1268 = vmatpush1.msra.mxu0 0.0
    %1269 = vmatprep.subr.mxu0 0.0
    %1270 = vmatpush1.msra.mxu0 0.0
    %1271 = vmatprep.subr.mxu0 0.0
    %1272 = vmatpush1.msra.mxu0 0.0
    %1273 = vmatprep.subr.mxu0 0.0
    %1274 = vmatpush1.msra.mxu0 0.0
    %1275 = vmatprep.subr.mxu0 0.0
    %1276 = vmatpush1.msra.mxu0 0.0
    %1277 = vmatprep.subr.mxu0 0.0
    %1278 = vmatpush1.msra.mxu0 0.0
    %1279 = vmatprep.subr.mxu0 0.0
    %1280 = vmatpush1.msra.mxu0 0.0
    %1281 = vmatprep.subr.mxu0 0.0
    %1282 = vmatpush1.msra.mxu0 0.0
    %1283 = vmatprep.subr.mxu0 0.0
    %1284 = vmatpush1.msra.mxu0 0.0
    %1285 = vmatprep.mubr.f32.mxu0 0.0
    %v1286 = vand.u32 %v730, 4294901760
    %1287 = vmatmul.mubr.f32.gmra.mrb[0].mxu0 %v1286
    %v1288 = vpop.f32.mrb[0].mxu0
    %v1289 = vadd.f32 %v1170, %v1288
    %v1290 = vpop.f32.mrb[0].mxu0
    %1291 = vdwg.mxu0
    %1292 = vmatprep.subr.mxu0 0.0
    %v1293 = vand.u32 %v65, 4294901760
    %1294 = vmatpush1.msra.mxu0 %v1293
    %1295 = vmatprep.subr.mxu0 0.0
    %v1296 = vand.u32 %v66, 4294901760
    %1297 = vmatpush1.msra.mxu0 %v1296
    %1298 = vmatprep.subr.mxu0 0.0
    %v1299 = vand.u32 %v67, 4294901760
    %1300 = vmatpush1.msra.mxu0 %v1299
    %1301 = vmatprep.subr.mxu0 0.0
    %v1302 = vand.u32 %v68, 4294901760
    %1303 = vmatpush1.msra.mxu0 %v1302
    %1304 = vmatprep.subr.mxu0 0.0
    %v1305 = vand.u32 %v69, 4294901760
    %1306 = vmatpush1.msra.mxu0 %v1305
    %1307 = vmatprep.subr.mxu0 0.0
    %v1308 = vand.u32 %v70, 4294901760
    %1309 = vmatpush1.msra.mxu0 %v1308
    %1310 = vmatprep.subr.mxu0 0.0
    %v1311 = vand.u32 %v71, 4294901760
    %1312 = vmatpush1.msra.mxu0 %v1311
    %1313 = vmatprep.subr.mxu0 0.0
    %v1314 = vand.u32 %v72, 4294901760
    %1315 = vmatpush1.msra.mxu0 %v1314
    %1316 = vmatprep.subr.mxu0 0.0
    %v1317 = vand.u32 %v73, 4294901760
    %1318 = vmatpush1.msra.mxu0 %v1317
    %1319 = vmatprep.subr.mxu0 0.0
    %v1320 = vand.u32 %v74, 4294901760
    %1321 = vmatpush1.msra.mxu0 %v1320
    %1322 = vmatprep.subr.mxu0 0.0
    %v1323 = vand.u32 %v75, 4294901760
    %1324 = vmatpush1.msra.mxu0 %v1323
    %1325 = vmatprep.subr.mxu0 0.0
    %v1326 = vand.u32 %v76, 4294901760
    %1327 = vmatpush1.msra.mxu0 %v1326
    %1328 = vmatprep.subr.mxu0 0.0
    %v1329 = vand.u32 %v77, 4294901760
    %1330 = vmatpush1.msra.mxu0 %v1329
    %1331 = vmatprep.subr.mxu0 0.0
    %v1332 = vand.u32 %v78, 4294901760
    %1333 = vmatpush1.msra.mxu0 %v1332
    %1334 = vmatprep.subr.mxu0 0.0
    %v1335 = vand.u32 %v79, 4294901760
    %1336 = vmatpush1.msra.mxu0 %v1335
    %1337 = vmatprep.subr.mxu0 0.0
    %v1338 = vand.u32 %v80, 4294901760
    %1339 = vmatpush1.msra.mxu0 %v1338
    %1340 = vmatprep.subr.mxu0 0.0
    %1341 = vmatpush1.msra.mxu0 0.0
    %1342 = vmatprep.subr.mxu0 0.0
    %1343 = vmatpush1.msra.mxu0 0.0
    %1344 = vmatprep.subr.mxu0 0.0
    %1345 = vmatpush1.msra.mxu0 0.0
    %1346 = vmatprep.subr.mxu0 0.0
    %1347 = vmatpush1.msra.mxu0 0.0
    %1348 = vmatprep.subr.mxu0 0.0
    %1349 = vmatpush1.msra.mxu0 0.0
    %1350 = vmatprep.subr.mxu0 0.0
    %1351 = vmatpush1.msra.mxu0 0.0
    %1352 = vmatprep.subr.mxu0 0.0
    %1353 = vmatpush1.msra.mxu0 0.0
    %1354 = vmatprep.subr.mxu0 0.0
    %1355 = vmatpush1.msra.mxu0 0.0
    %1356 = vmatprep.subr.mxu0 0.0
    %1357 = vmatpush1.msra.mxu0 0.0
    %1358 = vmatprep.subr.mxu0 0.0
    %1359 = vmatpush1.msra.mxu0 0.0
    %1360 = vmatprep.subr.mxu0 0.0
    %1361 = vmatpush1.msra.mxu0 0.0
    %1362 = vmatprep.subr.mxu0 0.0
    %1363 = vmatpush1.msra.mxu0 0.0
    %1364 = vmatprep.subr.mxu0 0.0
    %1365 = vmatpush1.msra.mxu0 0.0
    %1366 = vmatprep.subr.mxu0 0.0
    %1367 = vmatpush1.msra.mxu0 0.0
    %1368 = vmatprep.subr.mxu0 0.0
    %1369 = vmatpush1.msra.mxu0 0.0
    %1370 = vmatprep.subr.mxu0 0.0
    %1371 = vmatpush1.msra.mxu0 0.0
    %1372 = vmatprep.mubr.f32.mxu0 0.0
    %v1373 = vand.u32 %v730, 4294901760
    %1374 = vmatmul.mubr.f32.gmra.mrb[0].mxu0 %v1373
    %v1375 = vpop.f32.mrb[0].mxu0
    %v1376 = vadd.f32 %v1289, %v1375
    %v1377 = vpop.f32.mrb[0].mxu0
    %1378 = vdwg.mxu0
    %1379 = vst [vmem:[#allocation7] sm:$0xff] %v1376
    // Predicated region
    $region30: #{_forward.1} parent=1 // pred_check
      _
    $region31: #{_forward.1} parent=1 // pred_check_branch
      %1381 = sbr.rel (0) target = $region33
    $region32: #{_forward.1} parent=1 // pred_region
      %s1383 = ssub.s32 128, 128
      %1384 = vsyncadd [#allocation4], %s1383
      %s1386 = sshll.u32 [#allocation7], 4
      %s1387 = int_to_ptr.vmem [resolvable:$true] %s1386
      %1389 = dma.vmem_to_hbm [thread:$0]  %s1387, 128, %s5, [#allocation4]
    $region33: #{_forward.1} parent=1 // pred_fallthru
      _
    // Predicated region
    $region34: #{_forward.1} parent=1 // pred_check
      _
    $region35: #{_forward.1} parent=1 // pred_check_branch
      %1391 = sbr.rel (0) target = $region37
    $region36: #{_forward.1} parent=1 // pred_region
      %1392 = dma.done [#allocation4], 128
    $region37: #{_forward.1} parent=1 // pred_fallthru
      _
    %1393 = vsyncpa [#allocation3], 1
    %1394 = vsyncpa [#allocation6], 1
    %1395 = vsyncpa [#allocation4], 1

</llo_original>
